<compile_context>
chip_gen: v5e
topology: v5e:2x2
jax: 0.10.0
libtpu: 0.0.40
codegen_flags: <defaults>
</compile_context>

<pallas_src>
from functools import partial

import jax
import jax.numpy as jnp
from jax.experimental import pallas as pl
from jax.experimental.pallas import tpu as pltpu


# ------------------------- fused encoder kernel (grid over time) -------------------------
def encoder_kernel(x_ref, len_ref, wih_ref, whh_ref, b_ref,
                   enc_out_ref, h_ref, c_ref):
    t = pl.program_id(0)

    @pl.when(t == 0)
    def _():
        h_ref[...] = jnp.zeros_like(h_ref)
        c_ref[...] = jnp.zeros_like(c_ref)

    x = x_ref[0]                          # (B, E)
    h = h_ref[...]                        # (B, H) -- VMEM-resident across the grid
    c = c_ref[...]
    H = h.shape[-1]
    gates = (jnp.dot(x, wih_ref[...], preferred_element_type=jnp.float32)
             + jnp.dot(h, whh_ref[...], preferred_element_type=jnp.float32)
             + b_ref[...])                # (B, 4H); H % 128 == 0 -> lane-aligned slices
    i = jax.nn.sigmoid(gates[:, 0 * H:1 * H])
    f = jax.nn.sigmoid(gates[:, 1 * H:2 * H])
    g = jnp.tanh(gates[:, 2 * H:3 * H])
    o = jax.nn.sigmoid(gates[:, 3 * H:4 * H])
    c_cand = f * c + i * g
    h_cand = o * jnp.tanh(c_cand)

    # pack_padded_sequence behavior: stop updating h/c past each sequence's length,
    # and zero the encoder output at padded positions.
    valid = (t < len_ref[...]).astype(jnp.float32)        # (B, 1)
    h_new = valid * h_cand + (1.0 - valid) * h
    c_new = valid * c_cand + (1.0 - valid) * c
    h_ref[...] = h_new
    c_ref[...] = c_new
    enc_out_ref[...] = (h_new * valid)[None]              # (1, B, H)


def encoder_forward(x_seq, input_length, params):
    # x_seq: (N, B, E) f32 (embedding gather done in JAX glue); input_length: (B,) int32
    N, B, E = x_seq.shape
    H = params["enc_whh"].shape[0]
    lens = input_length.reshape(B, 1).astype(jnp.int32)
    enc_out, h, c = pl.pallas_call(
        encoder_kernel,
        grid=(N,),
        in_specs=[
            pl.BlockSpec((1, B, E), lambda t: (t, 0, 0)),       # one timestep per grid step
            pl.BlockSpec((B, 1), lambda t: (0, 0)),             # lengths, resident
            pl.BlockSpec((E, 4 * H), lambda t: (0, 0)),         # weights loaded once
            pl.BlockSpec((H, 4 * H), lambda t: (0, 0)),
            pl.BlockSpec((1, 4 * H), lambda t: (0, 0)),
        ],
        out_specs=[
            pl.BlockSpec((1, B, H), lambda t: (t, 0, 0)),       # encoder_outputs (N, B, H)
            pl.BlockSpec((B, H), lambda t: (0, 0)),             # final hidden (resident)
            pl.BlockSpec((B, H), lambda t: (0, 0)),             # final cell (resident)
        ],
        out_shape=[
            jax.ShapeDtypeStruct((N, B, H), jnp.float32),
            jax.ShapeDtypeStruct((B, H), jnp.float32),
            jax.ShapeDtypeStruct((B, H), jnp.float32),
        ],
        compiler_params=pltpu.CompilerParams(dimension_semantics=("arbitrary",)),
    )(x_seq, lens, params["enc_wih"], params["enc_whh"], params["enc_b"])
    return enc_out, h, c


# ----------------------- fused greedy decode kernel (whole loop) -----------------------
def decode_kernel(bos_ref, enc_ref, emb_ref, wih_ref, whh_ref, b_ref,
                  wch_ref, wcc_ref, bc_ref, wo_ref, bo_ref, h0_ref, c0_ref,
                  tok_ref):
    B, H = h0_ref.shape
    V = wo_ref.shape[1]
    L = tok_ref.shape[0]                                   # max_length (static)
    bos = bos_ref[0]                                       # SMEM scalar
    iota_v = jax.lax.broadcasted_iota(jnp.int32, (B, V), 1)
    row_iota = jax.lax.broadcasted_iota(jnp.int32, (L, B), 0)

    def step(s, carry):
        h, c, oh, toks = carry
        # embedding lookup of the current greedy token as a one-hot matmul (MXU, no gather)
        x = jnp.dot(oh, emb_ref[...], preferred_element_type=jnp.float32)       # (B, E)
        gates = (jnp.dot(x, wih_ref[...], preferred_element_type=jnp.float32)
                 + jnp.dot(h, whh_ref[...], preferred_element_type=jnp.float32)
                 + b_ref[...])                                                  # (B, 4H)
        i = jax.nn.sigmoid(gates[:, 0 * H:1 * H])
        f = jax.nn.sigmoid(gates[:, 1 * H:2 * H])
        g = jnp.tanh(gates[:, 2 * H:3 * H])
        o = jax.nn.sigmoid(gates[:, 3 * H:4 * H])
        c_new = f * c + i * g
        h_new = o * jnp.tanh(c_new)

        # Luong "dot" attention on the MXU (query length 1)
        enc = enc_ref[...]                                                      # (B, N, H)
        q = h_new[:, None, :]                                                   # (B, 1, H)
        s3 = jnp.einsum('bqh,bnh->bqn', q, enc,
                        preferred_element_type=jnp.float32)                     # (B, 1, N)
        m = jnp.max(s3, axis=-1, keepdims=True)
        e = jnp.exp(s3 - m)
        attn = e * pl.reciprocal(jnp.sum(e, axis=-1, keepdims=True), approx=True)
        ctx = jnp.einsum('bqn,bnh->bqh', attn, enc,
                         preferred_element_type=jnp.float32)[:, 0, :]           # (B, H)

        # concat([h, ctx]) @ wc  ==  h @ wc_h + ctx @ wc_ctx  (no lane-axis concat)
        ht = jnp.tanh(jnp.dot(h_new, wch_ref[...], preferred_element_type=jnp.float32)
                      + jnp.dot(ctx, wcc_ref[...], preferred_element_type=jnp.float32)
                      + bc_ref[...])
        logits = (jnp.dot(ht, wo_ref[...], preferred_element_type=jnp.float32)
                  + bo_ref[...])                                                # (B, V)

        # greedy topk(1): first index of the max (argmax of logits == argmax of softmax)
        mx = jnp.max(logits, axis=-1, keepdims=True)
        idx = jnp.min(jnp.where(logits == mx, iota_v, V), axis=-1)              # (B,) int32

        toks = jnp.where(row_iota == (s + 1), idx[None, :], toks)               # insert row s+1
        oh_new = (iota_v == idx[:, None]).astype(jnp.float32)                   # next one-hot
        return h_new, c_new, oh_new, toks

    h0 = h0_ref[...]
    c0 = c0_ref[...]
    oh0 = (iota_v == bos).astype(jnp.float32)
    toks0 = jnp.broadcast_to(bos, (L, B)).astype(jnp.int32)   # row 0 stays == bos
    _, _, _, toks = jax.lax.fori_loop(0, L - 1, step, (h0, c0, oh0, toks0))
    tok_ref[...] = toks                                        # single slab store


def greedy_decode(enc_bnh, h0, c0, bos_arr, max_length, params, wc_h, wc_c):
    B, _, _ = enc_bnh.shape
    n_vmem = 12
    in_specs = ([pl.BlockSpec(memory_space=pltpu.MemorySpace.SMEM)]
                + [pl.BlockSpec(memory_space=pltpu.MemorySpace.VMEM) for _ in range(n_vmem)])
    return pl.pallas_call(
        decode_kernel,
        out_shape=jax.ShapeDtypeStruct((max_length, B), jnp.int32),
        in_specs=in_specs,
        out_specs=pl.BlockSpec(memory_space=pltpu.MemorySpace.VMEM),
    )(bos_arr, enc_bnh, params["emb"], params["dec_wih"], params["dec_whh"],
      params["dec_b"], wc_h, wc_c, params["bc"], params["wo"], params["bo"], h0, c0)


# ------------------------------------ top-level glue ------------------------------------
@partial(jax.jit, static_argnames=("max_length",))
def greedy_search_decoder(input_seq, input_length, max_length, bos_token, params):
    # Mirrors GreedySearchDecoder.forward: pred_tokens row 0 is BOS, then max_length-1 tokens.
    H = params["enc_whh"].shape[0]
    x_seq = params["emb"][input_seq]                       # (N, B, E) embedding gather (glue)
    enc_out, enc_h, enc_c = encoder_forward(x_seq, input_length, params)
    enc_bnh = jnp.transpose(enc_out, (1, 0, 2))            # (B, N, H) for MXU attention
    wc_h = params["wc"][:H]                                # pre-split concat projection
    wc_c = params["wc"][H:]
    bos_arr = jnp.reshape(jnp.asarray(bos_token, dtype=jnp.int32), (1,))
    pred_tokens = greedy_decode(enc_bnh, enc_h, enc_c, bos_arr, max_length,
                                params, wc_h, wc_c)
    return pred_tokens                                     # (max_length, B) int32


# ------------------------------------------ main ------------------------------------------
def make_params(key, vocab, embed, hidden):
    ks = jax.random.split(key, 10)
    s = 0.1
    return {
        "emb":     s * jax.random.normal(ks[0], (vocab, embed), jnp.float32),
        "enc_wih": s * jax.random.normal(ks[1], (embed, 4 * hidden), jnp.float32),
        "enc_whh": s * jax.random.normal(ks[2], (hidden, 4 * hidden), jnp.float32),
        "enc_b":   s * jax.random.normal(ks[3], (1, 4 * hidden), jnp.float32),
        "dec_wih": s * jax.random.normal(ks[4], (embed, 4 * hidden), jnp.float32),
        "dec_whh": s * jax.random.normal(ks[5], (hidden, 4 * hidden), jnp.float32),
        "dec_b":   s * jax.random.normal(ks[6], (1, 4 * hidden), jnp.float32),
        "wc":      s * jax.random.normal(ks[7], (2 * hidden, hidden), jnp.float32),
        "bc":      jnp.zeros((1, hidden), jnp.float32),
        "wo":      s * jax.random.normal(ks[8], (hidden, vocab), jnp.float32),
        "bo":      jnp.zeros((1, vocab), jnp.float32),
    }


if __name__ == "__main__":
    # Hardware-tile-friendly small shapes: B -> sublane (8), E/H/V -> lane multiples (128).
    VOCAB, EMBED, HIDDEN = 128, 128, 128
    N, B = 8, 8
    MAX_LENGTH, BOS = 6, 1

    key = jax.random.PRNGKey(0)
    kp, ki = jax.random.split(key)
    params = make_params(kp, VOCAB, EMBED, HIDDEN)

    input_seq = jax.random.randint(ki, (N, B), 2, VOCAB, dtype=jnp.int32)      # (N, B)
    input_length = jnp.array([8, 5, 8, 3, 7, 2, 6, 8], dtype=jnp.int32)        # (B,)

    pred_tokens = greedy_search_decoder(input_seq, input_length, MAX_LENGTH, BOS, params)
    pred_tokens = jax.block_until_ready(pred_tokens)

    assert pred_tokens.shape == (MAX_LENGTH, B)
    assert pred_tokens.dtype == jnp.int32
    assert bool(jnp.all(pred_tokens[0] == BOS))
    assert bool(jnp.all((pred_tokens >= 0) & (pred_tokens < VOCAB)))
    print("KERNEL_OK")
</pallas_src>

<mosaic_0001>
module attributes {stable_mosaic.version = 11 : i64} {
  func.func @encoder_kernel(%arg0: i32, %arg1: memref<1x8x128xf32, #tpu.memory_space<vmem>>, %arg2: memref<8x1xi32, #tpu.memory_space<vmem>>, %arg3: memref<128x512xf32, #tpu.memory_space<vmem>>, %arg4: memref<128x512xf32, #tpu.memory_space<vmem>>, %arg5: memref<1x512xf32, #tpu.memory_space<vmem>>, %arg6: memref<1x8x128xf32, #tpu.memory_space<vmem>>, %arg7: memref<8x128xf32, #tpu.memory_space<vmem>>, %arg8: memref<8x128xf32, #tpu.memory_space<vmem>>) attributes {dimension_semantics = [#tpu.dimension_semantics<arbitrary>], iteration_bounds = array<i64: 8>, scalar_prefetch = 0 : i64, scratch_operands = 0 : i64, tpu.core_type = #tpu.core_type<tc>, window_params = [{transform_indices = @transform_0, window_bounds = array<i64: 1, 8, 128>}, {pipeline_mode = #tpu.pipeline_mode<synchronous>, transform_indices = @transform_1, window_bounds = array<i64: 8, 1>}, {pipeline_mode = #tpu.pipeline_mode<synchronous>, transform_indices = @transform_2, window_bounds = array<i64: 128, 512>}, {pipeline_mode = #tpu.pipeline_mode<synchronous>, transform_indices = @transform_3, window_bounds = array<i64: 128, 512>}, {pipeline_mode = #tpu.pipeline_mode<synchronous>, transform_indices = @transform_4, window_bounds = array<i64: 1, 512>}, {transform_indices = @transform_5, window_bounds = array<i64: 1, 8, 128>}, {pipeline_mode = #tpu.pipeline_mode<synchronous>, transform_indices = @transform_6, window_bounds = array<i64: 8, 128>}, {pipeline_mode = #tpu.pipeline_mode<synchronous>, transform_indices = @transform_7, window_bounds = array<i64: 8, 128>}]} {
    %c0_i32 = arith.constant 0 : i32
    %0 = arith.cmpi eq, %arg0, %c0_i32 : i32
    %1 = arith.extui %0 : i1 to i32
    %c0_i32_0 = arith.constant 0 : i32
    %2 = arith.cmpi ne, %1, %c0_i32_0 : i32
    scf.if %2 {
      %cst_28 = arith.constant 0.000000e+00 : f32
      %65 = vector.broadcast %cst_28 : f32 to vector<8x128xf32>
      %c0_29 = arith.constant 0 : index
      %c0_30 = arith.constant 0 : index
      %66 = vector.load %arg7[%c0_29, %c0_30] : memref<8x128xf32, #tpu.memory_space<vmem>>, vector<8x128xf32>
      tpu.vector_store %arg7[%c0_29, %c0_30], %65 {strides = array<i32>} : memref<8x128xf32, #tpu.memory_space<vmem>>, vector<8x128xf32>,
      %cst_31 = arith.constant 0.000000e+00 : f32
      %67 = vector.broadcast %cst_31 : f32 to vector<8x128xf32>
      %c0_32 = arith.constant 0 : index
      %c0_33 = arith.constant 0 : index
      %68 = vector.load %arg8[%c0_32, %c0_33] : memref<8x128xf32, #tpu.memory_space<vmem>>, vector<8x128xf32>
      tpu.vector_store %arg8[%c0_32, %c0_33], %67 {strides = array<i32>} : memref<8x128xf32, #tpu.memory_space<vmem>>, vector<8x128xf32>,
    } else {
    }
    %c0 = arith.constant 0 : index
    %c0_1 = arith.constant 0 : index
    %c0_2 = arith.constant 0 : index
    %3 = vector.load %arg1[%c0, %c0_1, %c0_2] : memref<1x8x128xf32, #tpu.memory_space<vmem>>, vector<1x8x128xf32>
    %4 = vector.shape_cast %3 : vector<1x8x128xf32> to vector<8x128xf32>
    %c0_3 = arith.constant 0 : index
    %c0_4 = arith.constant 0 : index
    %5 = vector.load %arg7[%c0_3, %c0_4] : memref<8x128xf32, #tpu.memory_space<vmem>>, vector<8x128xf32>
    %c0_5 = arith.constant 0 : index
    %c0_6 = arith.constant 0 : index
    %6 = vector.load %arg8[%c0_5, %c0_6] : memref<8x128xf32, #tpu.memory_space<vmem>>, vector<8x128xf32>
    %c0_7 = arith.constant 0 : index
    %c0_8 = arith.constant 0 : index
    %7 = vector.load %arg3[%c0_7, %c0_8] : memref<128x512xf32, #tpu.memory_space<vmem>>, vector<128x512xf32>
    %cst = arith.constant dense<0.000000e+00> : vector<8x512xf32>
    %8 = tpu.matmul %4, %7, %cst {dimension_numbers = #tpu.dot_dimension_numbers<[1], [0], [0], [1], [0, 0, 1, 1], [], []>} : vector<8x128xf32>, vector<128x512xf32>, vector<8x512xf32> -> vector<8x512xf32>
    %c0_9 = arith.constant 0 : index
    %c0_10 = arith.constant 0 : index
    %9 = vector.load %arg4[%c0_9, %c0_10] : memref<128x512xf32, #tpu.memory_space<vmem>>, vector<128x512xf32>
    %cst_11 = arith.constant dense<0.000000e+00> : vector<8x512xf32>
    %10 = tpu.matmul %5, %9, %cst_11 {dimension_numbers = #tpu.dot_dimension_numbers<[1], [0], [0], [1], [0, 0, 1, 1], [], []>} : vector<8x128xf32>, vector<128x512xf32>, vector<8x512xf32> -> vector<8x512xf32>
    %11 = arith.addf %8, %10 : vector<8x512xf32>
    %c0_12 = arith.constant 0 : index
    %c0_13 = arith.constant 0 : index
    %12 = vector.load %arg5[%c0_12, %c0_13] : memref<1x512xf32, #tpu.memory_space<vmem>>, vector<1x512xf32>
    %13 = vector.broadcast %12 : vector<1x512xf32> to vector<8x512xf32>
    %14 = arith.addf %11, %13 : vector<8x512xf32>
    %15 = vector.extract_strided_slice %14 {offsets = [0, 0], sizes = [8, 128], strides = [1, 1]} : vector<8x512xf32> to vector<8x128xf32>
    %16 = arith.negf %15 : vector<8x128xf32>
    %17 = math.exp %16 : vector<8x128xf32>
    %cst_14 = arith.constant 1.000000e+00 : f32
    %18 = vector.broadcast %cst_14 : f32 to vector<8x128xf32>
    %19 = arith.addf %18, %17 : vector<8x128xf32>
    %20 = arith.divf %18, %19 : vector<8x128xf32>
    %21 = vector.extract_strided_slice %14 {offsets = [0, 128], sizes = [8, 128], strides = [1, 1]} : vector<8x512xf32> to vector<8x128xf32>
    %22 = arith.negf %21 : vector<8x128xf32>
    %23 = math.exp %22 : vector<8x128xf32>
    %cst_15 = arith.constant 1.000000e+00 : f32
    %24 = vector.broadcast %cst_15 : f32 to vector<8x128xf32>
    %25 = arith.addf %24, %23 : vector<8x128xf32>
    %26 = arith.divf %24, %25 : vector<8x128xf32>
    %27 = vector.extract_strided_slice %14 {offsets = [0, 256], sizes = [8, 128], strides = [1, 1]} : vector<8x512xf32> to vector<8x128xf32>
    %28 = math.tanh %27 : vector<8x128xf32>
    %29 = vector.extract_strided_slice %14 {offsets = [0, 384], sizes = [8, 128], strides = [1, 1]} : vector<8x512xf32> to vector<8x128xf32>
    %30 = arith.negf %29 : vector<8x128xf32>
    %31 = math.exp %30 : vector<8x128xf32>
    %cst_16 = arith.constant 1.000000e+00 : f32
    %32 = vector.broadcast %cst_16 : f32 to vector<8x128xf32>
    %33 = arith.addf %32, %31 : vector<8x128xf32>
    %34 = arith.divf %32, %33 : vector<8x128xf32>
    %35 = arith.mulf %26, %6 : vector<8x128xf32>
    %36 = arith.mulf %20, %28 : vector<8x128xf32>
    %37 = arith.addf %35, %36 : vector<8x128xf32>
    %38 = math.tanh %37 : vector<8x128xf32>
    %39 = arith.mulf %34, %38 : vector<8x128xf32>
    %c0_17 = arith.constant 0 : index
    %c0_18 = arith.constant 0 : index
    %40 = vector.load %arg2[%c0_17, %c0_18] : memref<8x1xi32, #tpu.memory_space<vmem>>, vector<8x1xi32>
    %41 = vector.broadcast %arg0 : i32 to vector<8x1xi32>
    %42 = arith.cmpi slt, %41, %40 : vector<8x1xi32>
    %43 = arith.extui %42 : vector<8x1xi1> to vector<8x1xi32>
    %44 = arith.sitofp %43 : vector<8x1xi32> to vector<8x1xf32>
    %45 = vector.broadcast %44 : vector<8x1xf32> to vector<8x128xf32>
    %46 = arith.mulf %45, %39 : vector<8x128xf32>
    %cst_19 = arith.constant 1.000000e+00 : f32
    %47 = vector.broadcast %cst_19 : f32 to vector<8x1xf32>
    %48 = arith.subf %47, %44 : vector<8x1xf32>
    %49 = vector.broadcast %48 : vector<8x1xf32> to vector<8x128xf32>
    %50 = arith.mulf %49, %5 : vector<8x128xf32>
    %51 = arith.addf %46, %50 : vector<8x128xf32>
    %52 = vector.broadcast %44 : vector<8x1xf32> to vector<8x128xf32>
    %53 = arith.mulf %52, %37 : vector<8x128xf32>
    %cst_20 = arith.constant 1.000000e+00 : f32
    %54 = vector.broadcast %cst_20 : f32 to vector<8x1xf32>
    %55 = arith.subf %54, %44 : vector<8x1xf32>
    %56 = vector.broadcast %55 : vector<8x1xf32> to vector<8x128xf32>
    %57 = arith.mulf %56, %6 : vector<8x128xf32>
    %58 = arith.addf %53, %57 : vector<8x128xf32>
    %c0_21 = arith.constant 0 : index
    %c0_22 = arith.constant 0 : index
    %59 = vector.load %arg7[%c0_21, %c0_22] : memref<8x128xf32, #tpu.memory_space<vmem>>, vector<8x128xf32>
    tpu.vector_store %arg7[%c0_21, %c0_22], %51 {strides = array<i32>} : memref<8x128xf32, #tpu.memory_space<vmem>>, vector<8x128xf32>,
    %c0_23 = arith.constant 0 : index
    %c0_24 = arith.constant 0 : index
    %60 = vector.load %arg8[%c0_23, %c0_24] : memref<8x128xf32, #tpu.memory_space<vmem>>, vector<8x128xf32>
    tpu.vector_store %arg8[%c0_23, %c0_24], %58 {strides = array<i32>} : memref<8x128xf32, #tpu.memory_space<vmem>>, vector<8x128xf32>,
    %61 = vector.broadcast %44 : vector<8x1xf32> to vector<8x128xf32>
    %62 = arith.mulf %51, %61 : vector<8x128xf32>
    %63 = vector.shape_cast %62 : vector<8x128xf32> to vector<1x8x128xf32>
    %c0_25 = arith.constant 0 : index
    %c0_26 = arith.constant 0 : index
    %c0_27 = arith.constant 0 : index
    %64 = vector.load %arg6[%c0_25, %c0_26, %c0_27] : memref<1x8x128xf32, #tpu.memory_space<vmem>>, vector<1x8x128xf32>
    tpu.vector_store %arg6[%c0_25, %c0_26, %c0_27], %63 {strides = array<i32>} : memref<1x8x128xf32, #tpu.memory_space<vmem>>, vector<1x8x128xf32>,
    return
  }
  func.func @transform_0(%arg0: i32) -> (i32, i32, i32) {
    %c0_i32 = arith.constant 0 : i32
    %c0_i32_0 = arith.constant 0 : i32
    %c0_i32_1 = arith.constant 0 : i32
    return %arg0, %c0_i32, %c0_i32_0 : i32, i32, i32
  }
  func.func @transform_1(%arg0: i32) -> (i32, i32) {
    %c0_i32 = arith.constant 0 : i32
    %c0_i32_0 = arith.constant 0 : i32
    %c0_i32_1 = arith.constant 0 : i32
    return %c0_i32, %c0_i32_0 : i32, i32
  }
  func.func @transform_2(%arg0: i32) -> (i32, i32) {
    %c0_i32 = arith.constant 0 : i32
    %c0_i32_0 = arith.constant 0 : i32
    %c0_i32_1 = arith.constant 0 : i32
    return %c0_i32, %c0_i32_0 : i32, i32
  }
  func.func @transform_3(%arg0: i32) -> (i32, i32) {
    %c0_i32 = arith.constant 0 : i32
    %c0_i32_0 = arith.constant 0 : i32
    %c0_i32_1 = arith.constant 0 : i32
    return %c0_i32, %c0_i32_0 : i32, i32
  }
  func.func @transform_4(%arg0: i32) -> (i32, i32) {
    %c0_i32 = arith.constant 0 : i32
    %c0_i32_0 = arith.constant 0 : i32
    %c0_i32_1 = arith.constant 0 : i32
    return %c0_i32, %c0_i32_0 : i32, i32
  }
  func.func @transform_5(%arg0: i32) -> (i32, i32, i32) {
    %c0_i32 = arith.constant 0 : i32
    %c0_i32_0 = arith.constant 0 : i32
    %c0_i32_1 = arith.constant 0 : i32
    return %arg0, %c0_i32, %c0_i32_0 : i32, i32, i32
  }
  func.func @transform_6(%arg0: i32) -> (i32, i32) {
    %c0_i32 = arith.constant 0 : i32
    %c0_i32_0 = arith.constant 0 : i32
    %c0_i32_1 = arith.constant 0 : i32
    return %c0_i32, %c0_i32_0 : i32, i32
  }
  func.func @transform_7(%arg0: i32) -> (i32, i32) {
    %c0_i32 = arith.constant 0 : i32
    %c0_i32_0 = arith.constant 0 : i32
    %c0_i32_1 = arith.constant 0 : i32
    return %c0_i32, %c0_i32_0 : i32, i32
  }
}

module attributes {stable_mosaic.version = 11 : i64} {
  func.func @decode_kernel(%arg0: memref<1xi32, #tpu.memory_space<smem>>, %arg1: memref<8x8x128xf32, #tpu.memory_space<vmem>>, %arg2: memref<128x128xf32, #tpu.memory_space<vmem>>, %arg3: memref<128x512xf32, #tpu.memory_space<vmem>>, %arg4: memref<128x512xf32, #tpu.memory_space<vmem>>, %arg5: memref<1x512xf32, #tpu.memory_space<vmem>>, %arg6: memref<128x128xf32, #tpu.memory_space<vmem>>, %arg7: memref<128x128xf32, #tpu.memory_space<vmem>>, %arg8: memref<1x128xf32, #tpu.memory_space<vmem>>, %arg9: memref<128x128xf32, #tpu.memory_space<vmem>>, %arg10: memref<1x128xf32, #tpu.memory_space<vmem>>, %arg11: memref<8x128xf32, #tpu.memory_space<vmem>>, %arg12: memref<8x128xf32, #tpu.memory_space<vmem>>, %arg13: memref<6x8xi32, #tpu.memory_space<vmem>>) attributes {dimension_semantics = [], scalar_prefetch = 0 : i64, scratch_operands = 0 : i64, tpu.core_type = #tpu.core_type<tc>} {
    %c0 = arith.constant 0 : index
    %0 = memref.load %arg0[%c0] : memref<1xi32, #tpu.memory_space<smem>>
    %1 = tpu.iota {dimensions = array<i32: 1>} : vector<8x128xi32>
    %2 = tpu.iota {dimensions = array<i32: 0>} : vector<6x8xi32>
    %c0_0 = arith.constant 0 : index
    %c0_1 = arith.constant 0 : index
    %3 = vector.load %arg11[%c0_0, %c0_1] : memref<8x128xf32, #tpu.memory_space<vmem>>, vector<8x128xf32>
    %c0_2 = arith.constant 0 : index
    %c0_3 = arith.constant 0 : index
    %4 = vector.load %arg12[%c0_2, %c0_3] : memref<8x128xf32, #tpu.memory_space<vmem>>, vector<8x128xf32>
    %5 = vector.broadcast %0 : i32 to vector<8x128xi32>
    %6 = arith.cmpi eq, %1, %5 : vector<8x128xi32>
    %7 = arith.extui %6 : vector<8x128xi1> to vector<8x128xi32>
    %8 = arith.sitofp %7 : vector<8x128xi32> to vector<8x128xf32>
    %9 = vector.broadcast %0 : i32 to vector<6x8xi32>
    %c0_i32 = arith.constant 0 : i32
    %c5_i32 = arith.constant 5 : i32
    %10 = arith.addi %c0_i32, %c5_i32 : i32
    %c1_i32 = arith.constant 1 : i32
    %11:4 = scf.for %arg14 = %c0_i32 to %10 step %c1_i32 iter_args(%arg15 = %3, %arg16 = %4, %arg17 = %8, %arg18 = %9) -> (vector<8x128xf32>, vector<8x128xf32>, vector<8x128xf32>, vector<6x8xi32>)  : i32 {
      %c0_7 = arith.constant 0 : index
      %c0_8 = arith.constant 0 : index
      %13 = vector.load %arg2[%c0_7, %c0_8] : memref<128x128xf32, #tpu.memory_space<vmem>>, vector<128x128xf32>
      %cst = arith.constant dense<0.000000e+00> : vector<8x128xf32>
      %14 = tpu.matmul %arg17, %13, %cst {dimension_numbers = #tpu.dot_dimension_numbers<[1], [0], [0], [1], [0, 0, 1, 1], [], []>} : vector<8x128xf32>, vector<128x128xf32>, vector<8x128xf32> -> vector<8x128xf32>
      %c0_9 = arith.constant 0 : index
      %c0_10 = arith.constant 0 : index
      %15 = vector.load %arg3[%c0_9, %c0_10] : memref<128x512xf32, #tpu.memory_space<vmem>>, vector<128x512xf32>
      %cst_11 = arith.constant dense<0.000000e+00> : vector<8x512xf32>
      %16 = tpu.matmul %14, %15, %cst_11 {dimension_numbers = #tpu.dot_dimension_numbers<[1], [0], [0], [1], [0, 0, 1, 1], [], []>} : vector<8x128xf32>, vector<128x512xf32>, vector<8x512xf32> -> vector<8x512xf32>
      %c0_12 = arith.constant 0 : index
      %c0_13 = arith.constant 0 : index
      %17 = vector.load %arg4[%c0_12, %c0_13] : memref<128x512xf32, #tpu.memory_space<vmem>>, vector<128x512xf32>
      %cst_14 = arith.constant dense<0.000000e+00> : vector<8x512xf32>
      %18 = tpu.matmul %arg15, %17, %cst_14 {dimension_numbers = #tpu.dot_dimension_numbers<[1], [0], [0], [1], [0, 0, 1, 1], [], []>} : vector<8x128xf32>, vector<128x512xf32>, vector<8x512xf32> -> vector<8x512xf32>
      %19 = arith.addf %16, %18 : vector<8x512xf32>
      %c0_15 = arith.constant 0 : index
      %c0_16 = arith.constant 0 : index
      %20 = vector.load %arg5[%c0_15, %c0_16] : memref<1x512xf32, #tpu.memory_space<vmem>>, vector<1x512xf32>
      %21 = vector.broadcast %20 : vector<1x512xf32> to vector<8x512xf32>
      %22 = arith.addf %19, %21 : vector<8x512xf32>
      %23 = vector.extract_strided_slice %22 {offsets = [0, 0], sizes = [8, 128], strides = [1, 1]} : vector<8x512xf32> to vector<8x128xf32>
      %24 = arith.negf %23 : vector<8x128xf32>
      %25 = math.exp %24 : vector<8x128xf32>
      %cst_17 = arith.constant 1.000000e+00 : f32
      %26 = vector.broadcast %cst_17 : f32 to vector<8x128xf32>
      %27 = arith.addf %26, %25 : vector<8x128xf32>
      %28 = arith.divf %26, %27 : vector<8x128xf32>
      %29 = vector.extract_strided_slice %22 {offsets = [0, 128], sizes = [8, 128], strides = [1, 1]} : vector<8x512xf32> to vector<8x128xf32>
      %30 = arith.negf %29 : vector<8x128xf32>
      %31 = math.exp %30 : vector<8x128xf32>
      %cst_18 = arith.constant 1.000000e+00 : f32
      %32 = vector.broadcast %cst_18 : f32 to vector<8x128xf32>
      %33 = arith.addf %32, %31 : vector<8x128xf32>
      %34 = arith.divf %32, %33 : vector<8x128xf32>
      %35 = vector.extract_strided_slice %22 {offsets = [0, 256], sizes = [8, 128], strides = [1, 1]} : vector<8x512xf32> to vector<8x128xf32>
      %36 = math.tanh %35 : vector<8x128xf32>
      %37 = vector.extract_strided_slice %22 {offsets = [0, 384], sizes = [8, 128], strides = [1, 1]} : vector<8x512xf32> to vector<8x128xf32>
      %38 = arith.negf %37 : vector<8x128xf32>
      %39 = math.exp %38 : vector<8x128xf32>
      %cst_19 = arith.constant 1.000000e+00 : f32
      %40 = vector.broadcast %cst_19 : f32 to vector<8x128xf32>
      %41 = arith.addf %40, %39 : vector<8x128xf32>
      %42 = arith.divf %40, %41 : vector<8x128xf32>
      %43 = arith.mulf %34, %arg16 : vector<8x128xf32>
      %44 = arith.mulf %28, %36 : vector<8x128xf32>
      %45 = arith.addf %43, %44 : vector<8x128xf32>
      %46 = math.tanh %45 : vector<8x128xf32>
      %47 = arith.mulf %42, %46 : vector<8x128xf32>
      %c0_20 = arith.constant 0 : index
      %c0_21 = arith.constant 0 : index
      %c0_22 = arith.constant 0 : index
      %48 = vector.load %arg1[%c0_20, %c0_21, %c0_22] : memref<8x8x128xf32, #tpu.memory_space<vmem>>, vector<8x8x128xf32>
      %49 = vector.shape_cast %47 : vector<8x128xf32> to vector<8x1x128xf32>
      "tpu.trace_start"() <{level = 10 : i32, message = "bqh,bnh->bqn"}> : () -> ()
      %cst_23 = arith.constant dense<0.000000e+00> : vector<8x1x8xf32>
      %50 = tpu.matmul %49, %48, %cst_23 {dimension_numbers = #tpu.dot_dimension_numbers<[2], [2], [1], [1], [0, 0, 0, 1, 1, 1], [0], [0]>} : vector<8x1x128xf32>, vector<8x8x128xf32>, vector<8x1x8xf32> -> vector<8x1x8xf32>
      "tpu.trace_stop"() : () -> ()
      %cst_24 = arith.constant dense<0xFF800000> : vector<8x1xf32>
      %51 = vector.multi_reduction <maximumf>, %50, %cst_24 [2] : vector<8x1x8xf32> to vector<8x1xf32>
      %52 = vector.shape_cast %51 : vector<8x1xf32> to vector<8x1x1xf32>
      %53 = vector.broadcast %52 : vector<8x1x1xf32> to vector<8x1x8xf32>
      %54 = arith.subf %50, %53 : vector<8x1x8xf32>
      %55 = math.exp %54 : vector<8x1x8xf32>
      %cst_25 = arith.constant dense<0.000000e+00> : vector<8x1xf32>
      %56 = vector.multi_reduction <add>, %55, %cst_25 [2] : vector<8x1x8xf32> to vector<8x1xf32>
      %57 = vector.shape_cast %56 : vector<8x1xf32> to vector<8x1x1xf32>
      %58 = tpu.reciprocal %57 {approx = true} : vector<8x1x1xf32> -> vector<8x1x1xf32>
      %59 = vector.broadcast %58 : vector<8x1x1xf32> to vector<8x1x8xf32>
      %60 = arith.mulf %55, %59 : vector<8x1x8xf32>
      "tpu.trace_start"() <{level = 10 : i32, message = "bqn,bnh->bqh"}> : () -> ()
      %cst_26 = arith.constant dense<0.000000e+00> : vector<8x1x128xf32>
      %61 = tpu.matmul %60, %48, %cst_26 {dimension_numbers = #tpu.dot_dimension_numbers<[2], [1], [1], [2], [0, 0, 0, 1, 1, 2], [0], [0]>} : vector<8x1x8xf32>, vector<8x8x128xf32>, vector<8x1x128xf32> -> vector<8x1x128xf32>
      "tpu.trace_stop"() : () -> ()
      %62 = vector.shape_cast %61 : vector<8x1x128xf32> to vector<8x128xf32>
      %c0_27 = arith.constant 0 : index
      %c0_28 = arith.constant 0 : index
      %63 = vector.load %arg6[%c0_27, %c0_28] : memref<128x128xf32, #tpu.memory_space<vmem>>, vector<128x128xf32>
      %cst_29 = arith.constant dense<0.000000e+00> : vector<8x128xf32>
      %64 = tpu.matmul %47, %63, %cst_29 {dimension_numbers = #tpu.dot_dimension_numbers<[1], [0], [0], [1], [0, 0, 1, 1], [], []>} : vector<8x128xf32>, vector<128x128xf32>, vector<8x128xf32> -> vector<8x128xf32>
      %c0_30 = arith.constant 0 : index
      %c0_31 = arith.constant 0 : index
      %65 = vector.load %arg7[%c0_30, %c0_31] : memref<128x128xf32, #tpu.memory_space<vmem>>, vector<128x128xf32>
      %cst_32 = arith.constant dense<0.000000e+00> : vector<8x128xf32>
      %66 = tpu.matmul %62, %65, %cst_32 {dimension_numbers = #tpu.dot_dimension_numbers<[1], [0], [0], [1], [0, 0, 1, 1], [], []>} : vector<8x128xf32>, vector<128x128xf32>, vector<8x128xf32> -> vector<8x128xf32>
      %67 = arith.addf %64, %66 : vector<8x128xf32>
      %c0_33 = arith.constant 0 : index
      %c0_34 = arith.constant 0 : index
      %68 = vector.load %arg8[%c0_33, %c0_34] : memref<1x128xf32, #tpu.memory_space<vmem>>, vector<1x128xf32>
      %69 = vector.broadcast %68 : vector<1x128xf32> to vector<8x128xf32>
      %70 = arith.addf %67, %69 : vector<8x128xf32>
      %71 = math.tanh %70 : vector<8x128xf32>
      %c0_35 = arith.constant 0 : index
      %c0_36 = arith.constant 0 : index
      %72 = vector.load %arg9[%c0_35, %c0_36] : memref<128x128xf32, #tpu.memory_space<vmem>>, vector<128x128xf32>
      %cst_37 = arith.constant dense<0.000000e+00> : vector<8x128xf32>
      %73 = tpu.matmul %71, %72, %cst_37 {dimension_numbers = #tpu.dot_dimension_numbers<[1], [0], [0], [1], [0, 0, 1, 1], [], []>} : vector<8x128xf32>, vector<128x128xf32>, vector<8x128xf32> -> vector<8x128xf32>
      %c0_38 = arith.constant 0 : index
      %c0_39 = arith.constant 0 : index
      %74 = vector.load %arg10[%c0_38, %c0_39] : memref<1x128xf32, #tpu.memory_space<vmem>>, vector<1x128xf32>
      %75 = vector.broadcast %74 : vector<1x128xf32> to vector<8x128xf32>
      %76 = arith.addf %73, %75 : vector<8x128xf32>
      %cst_40 = arith.constant dense<0xFF800000> : vector<8xf32>
      %77 = vector.multi_reduction <maximumf>, %76, %cst_40 [1] : vector<8x128xf32> to vector<8xf32>
      %78 = vector.shape_cast %77 : vector<8xf32> to vector<8x1xf32>
      %79 = vector.broadcast %78 : vector<8x1xf32> to vector<8x128xf32>
      %80 = arith.cmpf oeq, %76, %79 : vector<8x128xf32>
      %c128_i32 = arith.constant 128 : i32
      %81 = vector.broadcast %c128_i32 : i32 to vector<8x128xi32>
      %82 = arith.select %80, %1, %81 : vector<8x128xi1>, vector<8x128xi32>
      %cst_41 = arith.constant dense<2147483647> : vector<8xi32>
      %83 = vector.multi_reduction <minsi>, %82, %cst_41 [1] : vector<8x128xi32> to vector<8xi32>
      %c1_i32_42 = arith.constant 1 : i32
      %84 = arith.addi %arg14, %c1_i32_42 : i32
      %85 = vector.broadcast %84 : i32 to vector<6x8xi32>
      %86 = arith.cmpi eq, %2, %85 : vector<6x8xi32>
      %87 = vector.shape_cast %83 : vector<8xi32> to vector<1x8xi32>
      %88 = vector.shape_cast %87 : vector<1x8xi32> to vector<1x8xi32>
      %89 = vector.broadcast %88 : vector<1x8xi32> to vector<6x8xi32>
      %90 = arith.select %86, %89, %arg18 : vector<6x8xi1>, vector<6x8xi32>
      %91 = vector.shape_cast %83 : vector<8xi32> to vector<8x1xi32>
      %92 = vector.broadcast %91 : vector<8x1xi32> to vector<8x128xi32>
      %93 = arith.cmpi eq, %1, %92 : vector<8x128xi32>
      %94 = arith.extui %93 : vector<8x128xi1> to vector<8x128xi32>
      %95 = arith.sitofp %94 : vector<8x128xi32> to vector<8x128xf32>
      scf.yield %47, %45, %95, %90 : vector<8x128xf32>, vector<8x128xf32>, vector<8x128xf32>, vector<6x8xi32>
    }
    %c5_i32_4 = arith.constant 5 : i32
    %c0_5 = arith.constant 0 : index
    %c0_6 = arith.constant 0 : index
    %12 = vector.load %arg13[%c0_5, %c0_6] : memref<6x8xi32, #tpu.memory_space<vmem>>, vector<6x8xi32>
    tpu.vector_store %arg13[%c0_5, %c0_6], %11#3 {strides = array<i32>} : memref<6x8xi32, #tpu.memory_space<vmem>>, vector<6x8xi32>,
    return
  }
}

</mosaic_0001>

<llo_original>
// kernel: greedy_search_decoder.2
$region0: #{greedy_search_decoder.2}
  #allocation0 [shape = 'u32[]', space=smem, size = 0x4, offset = 0x4, fixed_abs, tag = 'smem constant byte address 0x4 - core index']
  #allocation1 [shape = 'u32[72,128]{1,0:T(1,128)}', space=vmem, size = 0x9000, scoped, tag = 'internal scratch']
  %s0 = inlined_call_operand.vmem [shape: f32[8,8,128], index: 0, kind: input, shape index: {}]
  %s1 = inlined_call_operand.vmem [shape: s32[8,1], index: 1, kind: input, shape index: {}]
  %s2 = inlined_call_operand.hbm [shape: f32[128,512], index: 2, kind: input, shape index: {}]
  %s3 = inlined_call_operand.hbm [shape: f32[128,512], index: 3, kind: input, shape index: {}]
  %s4 = inlined_call_operand.vmem [shape: f32[1,512], index: 4, kind: input, shape index: {}]
  %s5 = inlined_call_operand.vmem [shape: f32[8,8,128], index: 5, kind: output, shape index: {0}]
  %s6 = inlined_call_operand.vmem [shape: f32[8,128], index: 6, kind: output, shape index: {1}]
  %s7 = inlined_call_operand.vmem [shape: f32[8,128], index: 7, kind: output, shape index: {2}]
  %8 = xla_tuple %s5, %s6, %s7
  %s9 = sld [smem:[#allocation0]]
  $region81: #{greedy_search_decoder.2} parent=0
    _
  %s11 = ssub.s32 1, %s9
  %s12 = scalar_select 0, %s11, %s9
  $region1: #{greedy_search_decoder.2} parent=0
    #allocation2 [shape = 'u8[262144]{0}', space=vmem, size = 0x40000, scoped, tag = 'input window, operand 2, single buffered']
    #allocation3 [shape = 's32[2]{0}', space=sflag, size = 0x8, scoped, tag = 'scoped memory for greedy_search_decoder.2']
    #allocation4 [shape = 'u8[262144]{0}', space=vmem, size = 0x40000, scoped, tag = 'input window, operand 3, single buffered']
    #allocation5 [shape = 's32[1]{0}', space=sflag, size = 0x4, scoped, tag = 'scoped memory for greedy_search_decoder.2']
    %13 = vsyncpa [#allocation3], 0
    %14 = vsyncpa [#allocation5], 0
    loop: start=0, step=1, limit=10
    $region2: #{greedy_search_decoder.2} parent=1 // loop_pre_header
      _
    $region3: #{greedy_search_decoder.2} parent=1 // loop_header
      %s16 = sphi 0, %s20
      %p17 = scmp.ge.s32.totalorder %s16, 10
      %s26 = sphi 0, %s28
      %s29 = sphi 0, %s26
      %s30 = sphi 0, %s29
      %s46 = sphi 0, %s30
      %s50 = sphi 0, %s50
      %s52 = sphi 0, %s50
      %s53 = sphi 0, %s52
      %s67 = sphi 0, %s53
      %s71 = sphi 0, %s71
      %s73 = sphi 0, %s71
      %s74 = sphi 0, %s73
      %s88 = sphi 0, %s74
      %s92 = sphi 0, %s92
      %s94 = sphi 0, %s92
      %s95 = sphi 0, %s94
      %s109 = sphi 0, %s95
      %s113 = sphi 0, %s113
      %s115 = sphi 0, %s113
      %s116 = sphi 0, %s115
      %s130 = sphi 0, %s116
      %s136 = sphi 0, %s138
      %s139 = sphi 0, %s136
      %s140 = sphi 0, %s139
      %s156 = sphi 0, %s140
      %s160 = sphi 0, %s160
      %s162 = sphi 0, %s160
      %s163 = sphi 0, %s162
      %s177 = sphi 0, %s163
      %s181 = sphi 0, %s181
      %s183 = sphi 0, %s181
      %s184 = sphi 0, %s183
      %s198 = sphi 0, %s184
    $region4: #{greedy_search_decoder.2} parent=1 // loop_header_branch
      %19 = sbr.rel (%p17) target = $region8
    $region5: #{greedy_search_decoder.2} parent=1 // loop_body
      %s21 = ssub.s32 %s16, 1
      %s22 = ssub.s32 %s16, 2
      %s23 = sadd.s32 %s16, 1
      %s24 = ssub.s32 %s16, %s23
      %p25 = scmp.eq.s32.totalorder %s24, 0
      %s27 = sadd.s32 %s26, 1
      %s28 = scalar_select %p25, %s26, %s27
      %p31 = pneg %p25
      %p32 = scmp.eq.s32.totalorder %s16, 7
      %p33 = por %p31, %p32
      %p34 = scmp.ne.s32.totalorder %s26, %s29
      %p35 = scmp.eq.s32.totalorder %s16, 0
      %p36 = por %p34, %p35
      %p37 = scmp.ne.s32.totalorder %s26, %s29
      %p38 = scmp.eq.s32.totalorder %s21, 7
      %p39 = por %p37, %p38
      %p40 = scmp.ne.s32.totalorder %s29, %s30
      %p41 = scmp.eq.s32.totalorder %s21, 0
      %p42 = por %p40, %p41
      %p43 = scmp.ne.s32.totalorder %s29, %s30
      %p44 = scmp.eq.s32.totalorder %s22, 7
      %p45 = por %p43, %p44
      %p47 = scmp.ne.s32.totalorder %s30, %s46
      %p48 = scmp.eq.s32.totalorder %s22, 0
      %p49 = por %p47, %p48
      %s51 = sadd.s32 %s50, 1
      %p54 = scmp.eq.s32.totalorder %s16, 7
      %p55 = scmp.ne.s32.totalorder %s50, %s52
      %p56 = scmp.eq.s32.totalorder %s16, 0
      %p57 = por %p55, %p56
      %p58 = scmp.ne.s32.totalorder %s50, %s52
      %p59 = scmp.eq.s32.totalorder %s21, 7
      %p60 = por %p58, %p59
      %p61 = scmp.ne.s32.totalorder %s52, %s53
      %p62 = scmp.eq.s32.totalorder %s21, 0
      %p63 = por %p61, %p62
      %p64 = scmp.ne.s32.totalorder %s52, %s53
      %p65 = scmp.eq.s32.totalorder %s22, 7
      %p66 = por %p64, %p65
      %p68 = scmp.ne.s32.totalorder %s53, %s67
      %p69 = scmp.eq.s32.totalorder %s22, 0
      %p70 = por %p68, %p69
      %s72 = sadd.s32 %s71, 1
      %p75 = scmp.eq.s32.totalorder %s16, 7
      %p76 = scmp.ne.s32.totalorder %s71, %s73
      %p77 = scmp.eq.s32.totalorder %s16, 0
      %p78 = por %p76, %p77
      %p79 = scmp.ne.s32.totalorder %s71, %s73
      %p80 = scmp.eq.s32.totalorder %s21, 7
      %p81 = por %p79, %p80
      %p82 = scmp.ne.s32.totalorder %s73, %s74
      %p83 = scmp.eq.s32.totalorder %s21, 0
      %p84 = por %p82, %p83
      %p85 = scmp.ne.s32.totalorder %s73, %s74
      %p86 = scmp.eq.s32.totalorder %s22, 7
      %p87 = por %p85, %p86
      %p89 = scmp.ne.s32.totalorder %s74, %s88
      %p90 = scmp.eq.s32.totalorder %s22, 0
      %p91 = por %p89, %p90
      %s93 = sadd.s32 %s92, 1
      %p96 = scmp.eq.s32.totalorder %s16, 7
      %p97 = scmp.ne.s32.totalorder %s92, %s94
      %p98 = scmp.eq.s32.totalorder %s16, 0
      %p99 = por %p97, %p98
      %p100 = scmp.ne.s32.totalorder %s92, %s94
      %p101 = scmp.eq.s32.totalorder %s21, 7
      %p102 = por %p100, %p101
      %p103 = scmp.ne.s32.totalorder %s94, %s95
      %p104 = scmp.eq.s32.totalorder %s21, 0
      %p105 = por %p103, %p104
      %p106 = scmp.ne.s32.totalorder %s94, %s95
      %p107 = scmp.eq.s32.totalorder %s22, 7
      %p108 = por %p106, %p107
      %p110 = scmp.ne.s32.totalorder %s95, %s109
      %p111 = scmp.eq.s32.totalorder %s22, 0
      %p112 = por %p110, %p111
      %s114 = sadd.s32 %s113, 1
      %p117 = scmp.eq.s32.totalorder %s16, 7
      %p118 = scmp.ne.s32.totalorder %s113, %s115
      %p119 = scmp.eq.s32.totalorder %s16, 0
      %p120 = por %p118, %p119
      %p121 = scmp.ne.s32.totalorder %s113, %s115
      %p122 = scmp.eq.s32.totalorder %s21, 7
      %p123 = por %p121, %p122
      %p124 = scmp.ne.s32.totalorder %s115, %s116
      %p125 = scmp.eq.s32.totalorder %s21, 0
      %p126 = por %p124, %p125
      %p127 = scmp.ne.s32.totalorder %s115, %s116
      %p128 = scmp.eq.s32.totalorder %s22, 7
      %p129 = por %p127, %p128
      %p131 = scmp.ne.s32.totalorder %s116, %s130
      %p132 = scmp.eq.s32.totalorder %s22, 0
      %p133 = por %p131, %p132
      %s134 = ssub.s32 %s16, %s23
      %p135 = scmp.eq.s32.totalorder %s134, 0
      %s137 = sadd.s32 %s136, 1
      %s138 = scalar_select %p135, %s136, %s137
      %p141 = pneg %p135
      %p142 = scmp.eq.s32.totalorder %s16, 7
      %p143 = por %p141, %p142
      %p144 = scmp.ne.s32.totalorder %s136, %s139
      %p145 = scmp.eq.s32.totalorder %s16, 0
      %p146 = por %p144, %p145
      %p147 = scmp.ne.s32.totalorder %s136, %s139
      %p148 = scmp.eq.s32.totalorder %s21, 7
      %p149 = por %p147, %p148
      %p150 = scmp.ne.s32.totalorder %s139, %s140
      %p151 = scmp.eq.s32.totalorder %s21, 0
      %p152 = por %p150, %p151
      %p153 = scmp.ne.s32.totalorder %s139, %s140
      %p154 = scmp.eq.s32.totalorder %s22, 7
      %p155 = por %p153, %p154
      %p157 = scmp.ne.s32.totalorder %s140, %s156
      %p158 = scmp.eq.s32.totalorder %s22, 0
      %p159 = por %p157, %p158
      %s161 = sadd.s32 %s160, 1
      %p164 = scmp.eq.s32.totalorder %s16, 7
      %p165 = scmp.ne.s32.totalorder %s160, %s162
      %p166 = scmp.eq.s32.totalorder %s16, 0
      %p167 = por %p165, %p166
      %p168 = scmp.ne.s32.totalorder %s160, %s162
      %p169 = scmp.eq.s32.totalorder %s21, 7
      %p170 = por %p168, %p169
      %p171 = scmp.ne.s32.totalorder %s162, %s163
      %p172 = scmp.eq.s32.totalorder %s21, 0
      %p173 = por %p171, %p172
      %p174 = scmp.ne.s32.totalorder %s162, %s163
      %p175 = scmp.eq.s32.totalorder %s22, 7
      %p176 = por %p174, %p175
      %p178 = scmp.ne.s32.totalorder %s163, %s177
      %p179 = scmp.eq.s32.totalorder %s22, 0
      %p180 = por %p178, %p179
      %s182 = sadd.s32 %s181, 1
      %p185 = scmp.eq.s32.totalorder %s16, 7
      %p186 = scmp.ne.s32.totalorder %s181, %s183
      %p187 = scmp.eq.s32.totalorder %s16, 0
      %p188 = por %p186, %p187
      %p189 = scmp.ne.s32.totalorder %s181, %s183
      %p190 = scmp.eq.s32.totalorder %s21, 7
      %p191 = por %p189, %p190
      %p192 = scmp.ne.s32.totalorder %s183, %s184
      %p193 = scmp.eq.s32.totalorder %s21, 0
      %p194 = por %p192, %p193
      %p195 = scmp.ne.s32.totalorder %s183, %s184
      %p196 = scmp.eq.s32.totalorder %s22, 7
      %p197 = por %p195, %p196
      %p199 = scmp.ne.s32.totalorder %s184, %s198
      %p200 = scmp.eq.s32.totalorder %s22, 0
      %p201 = por %p199, %p200
      %p202 = scmp.le.s32.totalorder 1, %s16
      %p203 = scmp.lt.s32.totalorder %s16, 9
      %p204 = pnand %p202, %p203
      %p205 = pneg %p204
      // Predicated region
      $region9: #{greedy_search_decoder.2} parent=5 // pred_check
        _
      $region10: #{greedy_search_decoder.2} parent=5 // pred_check_branch
        %207 = sbr.rel (%p204) target = $region12
      $region11: #{greedy_search_decoder.2} parent=5 // pred_region
        %s208 = ssub.s32 %s16, 1
        // Predicated region
        $region13: #{greedy_search_decoder.2} parent=11 // pred_check
          %p209 = pneg %p63
        $region14: #{greedy_search_decoder.2} parent=11 // pred_check_branch
          %211 = sbr.rel (%p209) target = $region16
        $region15: #{greedy_search_decoder.2} parent=11 // pred_region
          _
        $region16: #{greedy_search_decoder.2} parent=11 // pred_fallthru
          _
        // Predicated region
        $region17: #{greedy_search_decoder.2} parent=11 // pred_check
          %p212 = pneg %p84
        $region18: #{greedy_search_decoder.2} parent=11 // pred_check_branch
          %214 = sbr.rel (%p212) target = $region20
        $region19: #{greedy_search_decoder.2} parent=11 // pred_region
          %216 = vsyncadd [#allocation3], 0
          %s217 = sshll.u32 %s2, 4
          %s218 = int_to_ptr.hbm [resolvable:$true] %s217
          %s219 = sshll.u32 [#allocation2], 4
          %s220 = int_to_ptr.vmem [resolvable:$true] %s219
          %225 = dma.hbm_to_vmem [thread:$0]  %s218, 8192, %s220, [#allocation3], 512, 512, 32
        $region20: #{greedy_search_decoder.2} parent=11 // pred_fallthru
          _
        // Predicated region
        $region21: #{greedy_search_decoder.2} parent=11 // pred_check
          %p226 = pneg %p105
        $region22: #{greedy_search_decoder.2} parent=11 // pred_check_branch
          %228 = sbr.rel (%p226) target = $region24
        $region23: #{greedy_search_decoder.2} parent=11 // pred_region
          %230 = vsyncadd [#allocation5], 0
          %s231 = sshll.u32 %s3, 4
          %s232 = int_to_ptr.hbm [resolvable:$true] %s231
          %s233 = sshll.u32 [#allocation4], 4
          %s234 = int_to_ptr.vmem [resolvable:$true] %s233
          %239 = dma.hbm_to_vmem [thread:$0]  %s232, 8192, %s234, [#allocation5], 512, 512, 32
        $region24: #{greedy_search_decoder.2} parent=11 // pred_fallthru
          _
        // Predicated region
        $region25: #{greedy_search_decoder.2} parent=11 // pred_check
          %p240 = pneg %p126
        $region26: #{greedy_search_decoder.2} parent=11 // pred_check_branch
          %242 = sbr.rel (%p240) target = $region28
        $region27: #{greedy_search_decoder.2} parent=11 // pred_region
          _
        $region28: #{greedy_search_decoder.2} parent=11 // pred_fallthru
          _
      $region12: #{greedy_search_decoder.2} parent=5 // pred_fallthru
        _
      %p243 = scmp.lt.s32.totalorder %s16, 8
      // Predicated region
      $region29: #{greedy_search_decoder.2} parent=5 // pred_check
        %p244 = pneg %p243
      $region30: #{greedy_search_decoder.2} parent=5 // pred_check_branch
        %246 = sbr.rel (%p244) target = $region32
      $region31: #{greedy_search_decoder.2} parent=5 // pred_region
        // Predicated region
        $region33: #{greedy_search_decoder.2} parent=31 // pred_check
          %p247 = pneg %p36
        $region34: #{greedy_search_decoder.2} parent=31 // pred_check_branch
          %249 = sbr.rel (%p247) target = $region36
        $region35: #{greedy_search_decoder.2} parent=31 // pred_region
          %p250 = scmp.lt.s32.totalorder %s16, 7
          %s251 = scalar_select %p250, %s16, 7
          %s252 = smul.addr %s251, 8
          %s253 = scalar_lea.vmem %s0, %s252
        $region36: #{greedy_search_decoder.2} parent=31 // pred_fallthru
          _
      $region32: #{greedy_search_decoder.2} parent=5 // pred_fallthru
        _
      %p254 = scmp.le.s32.totalorder 1, %s16
      %p255 = scmp.lt.s32.totalorder %s16, 9
      %p256 = pnand %p254, %p255
      %p257 = pneg %p256
      // Predicated region
      $region37: #{greedy_search_decoder.2} parent=5 // pred_check
        _
      $region38: #{greedy_search_decoder.2} parent=5 // pred_check_branch
        %259 = sbr.rel (%p256) target = $region40
      $region39: #{greedy_search_decoder.2} parent=5 // pred_region
        %s260 = ssub.s32 %s16, 1
        // Predicated region
        $region41: #{greedy_search_decoder.2} parent=39 // pred_check
          %p261 = pneg %p84
        $region42: #{greedy_search_decoder.2} parent=39 // pred_check_branch
          %263 = sbr.rel (%p261) target = $region44
        $region43: #{greedy_search_decoder.2} parent=39 // pred_region
          %265 = dma.done [#allocation3], 8192
        $region44: #{greedy_search_decoder.2} parent=39 // pred_fallthru
          _
        // Predicated region
        $region45: #{greedy_search_decoder.2} parent=39 // pred_check
          %p266 = pneg %p105
        $region46: #{greedy_search_decoder.2} parent=39 // pred_check_branch
          %268 = sbr.rel (%p266) target = $region48
        $region47: #{greedy_search_decoder.2} parent=39 // pred_region
          %270 = dma.done [#allocation5], 8192
        $region48: #{greedy_search_decoder.2} parent=39 // pred_fallthru
          _
        %p271 = scmp.lt.s32.totalorder %s21, 7
        %s272 = scalar_select %p271, %s21, 7
        %s273 = smul.addr %s272, 8
        %s274 = scalar_lea.vmem %s0, %s273
        %p275 = pneg %p42
        %p276 = pneg %p39
        %p277 = pneg %p63
        %p278 = pneg %p60
        %p279 = pneg %p84
        %p280 = pneg %p81
        %p281 = pneg %p105
        %p282 = pneg %p102
        %p283 = pneg %p126
        %p284 = pneg %p123
        %p285 = pneg %p152
        %p286 = pneg %p149
        %p287 = scmp.lt.s32.totalorder %s21, 7
        %s288 = scalar_select %p287, %s21, 7
        %s289 = smul.addr %s288, 8
        %s290 = scalar_lea.vmem %s5, %s289
        %p291 = pneg %p173
        %p292 = pneg %p170
        %p293 = pneg %p194
        %p294 = pneg %p191
        %p295 = scmp.lt.s32.totalorder %s21, 7
        %s296 = scalar_select %p295, %s21, 7
        %s297 = smul.addr %s296, 8
        %s298 = scalar_lea.vmem %s0, %s297
        %p299 = scmp.lt.s32.totalorder %s21, 7
        %s300 = scalar_select %p299, %s21, 7
        %s301 = smul.addr %s300, 8
        %s302 = scalar_lea.vmem %s5, %s301
        %p303 = scmp.eq.s32.totalorder %s21, 0
        // Predicated region
        $region49: #{greedy_search_decoder.2} parent=39 // pred_check
          %p304 = pneg %p303
        $region50: #{greedy_search_decoder.2} parent=39 // pred_check_branch
          %306 = sbr.rel (%p304) target = $region52
        $region51: #{greedy_search_decoder.2} parent=39 // pred_region
          %307 = vst [vmem:[%s6] sm:$0xff] 0.0
          %308 = vst [vmem:[%s7] sm:$0xff] 0.0
        $region52: #{greedy_search_decoder.2} parent=39 // pred_fallthru
          _
        %v309 = vld [vmem:[%s298] sm:$0xff]
        %v310 = vld [vmem:[%s6] sm:$0xff]
        %v311 = vld [vmem:[%s7] sm:$0xff]
        %v312 = vld [vmem:[#allocation2] sm:$0xff]
        %v313 = vld [vmem:[#allocation2 + $0x8] sm:$0xff]
        %v314 = vld [vmem:[#allocation2 + $0x10] sm:$0xff]
        %v315 = vld [vmem:[#allocation2 + $0x18] sm:$0xff]
        %v316 = vld [vmem:[#allocation2 + $0x20] sm:$0xff]
        %v317 = vld [vmem:[#allocation2 + $0x28] sm:$0xff]
        %v318 = vld [vmem:[#allocation2 + $0x30] sm:$0xff]
        %v319 = vld [vmem:[#allocation2 + $0x38] sm:$0xff]
        %v320 = vld [vmem:[#allocation2 + $0x40] sm:$0xff]
        %v321 = vld [vmem:[#allocation2 + $0x48] sm:$0xff]
        %v322 = vld [vmem:[#allocation2 + $0x50] sm:$0xff]
        %v323 = vld [vmem:[#allocation2 + $0x58] sm:$0xff]
        %v324 = vld [vmem:[#allocation2 + $0x60] sm:$0xff]
        %v325 = vld [vmem:[#allocation2 + $0x68] sm:$0xff]
        %v326 = vld [vmem:[#allocation2 + $0x70] sm:$0xff]
        %v327 = vld [vmem:[#allocation2 + $0x78] sm:$0xff]
        %v328 = vld [vmem:[#allocation2 + $0x80] sm:$0xff]
        %v329 = vld [vmem:[#allocation2 + $0x88] sm:$0xff]
        %v330 = vld [vmem:[#allocation2 + $0x90] sm:$0xff]
        %v331 = vld [vmem:[#allocation2 + $0x98] sm:$0xff]
        %v332 = vld [vmem:[#allocation2 + $0xa0] sm:$0xff]
        %v333 = vld [vmem:[#allocation2 + $0xa8] sm:$0xff]
        %v334 = vld [vmem:[#allocation2 + $0xb0] sm:$0xff]
        %v335 = vld [vmem:[#allocation2 + $0xb8] sm:$0xff]
        %v336 = vld [vmem:[#allocation2 + $0xc0] sm:$0xff]
        %v337 = vld [vmem:[#allocation2 + $0xc8] sm:$0xff]
        %v338 = vld [vmem:[#allocation2 + $0xd0] sm:$0xff]
        %v339 = vld [vmem:[#allocation2 + $0xd8] sm:$0xff]
        %v340 = vld [vmem:[#allocation2 + $0xe0] sm:$0xff]
        %v341 = vld [vmem:[#allocation2 + $0xe8] sm:$0xff]
        %v342 = vld [vmem:[#allocation2 + $0xf0] sm:$0xff]
        %v343 = vld [vmem:[#allocation2 + $0xf8] sm:$0xff]
        %v344 = vld [vmem:[#allocation2 + $0x100] sm:$0xff]
        %v345 = vld [vmem:[#allocation2 + $0x108] sm:$0xff]
        %v346 = vld [vmem:[#allocation2 + $0x110] sm:$0xff]
        %v347 = vld [vmem:[#allocation2 + $0x118] sm:$0xff]
        %v348 = vld [vmem:[#allocation2 + $0x120] sm:$0xff]
        %v349 = vld [vmem:[#allocation2 + $0x128] sm:$0xff]
        %v350 = vld [vmem:[#allocation2 + $0x130] sm:$0xff]
        %v351 = vld [vmem:[#allocation2 + $0x138] sm:$0xff]
        %v352 = vld [vmem:[#allocation2 + $0x140] sm:$0xff]
        %v353 = vld [vmem:[#allocation2 + $0x148] sm:$0xff]
        %v354 = vld [vmem:[#allocation2 + $0x150] sm:$0xff]
        %v355 = vld [vmem:[#allocation2 + $0x158] sm:$0xff]
        %v356 = vld [vmem:[#allocation2 + $0x160] sm:$0xff]
        %v357 = vld [vmem:[#allocation2 + $0x168] sm:$0xff]
        %v358 = vld [vmem:[#allocation2 + $0x170] sm:$0xff]
        %v359 = vld [vmem:[#allocation2 + $0x178] sm:$0xff]
        %v360 = vld [vmem:[#allocation2 + $0x180] sm:$0xff]
        %v361 = vld [vmem:[#allocation2 + $0x188] sm:$0xff]
        %v362 = vld [vmem:[#allocation2 + $0x190] sm:$0xff]
        %v363 = vld [vmem:[#allocation2 + $0x198] sm:$0xff]
        %v364 = vld [vmem:[#allocation2 + $0x1a0] sm:$0xff]
        %v365 = vld [vmem:[#allocation2 + $0x1a8] sm:$0xff]
        %v366 = vld [vmem:[#allocation2 + $0x1b0] sm:$0xff]
        %v367 = vld [vmem:[#allocation2 + $0x1b8] sm:$0xff]
        %v368 = vld [vmem:[#allocation2 + $0x1c0] sm:$0xff]
        %v369 = vld [vmem:[#allocation2 + $0x1c8] sm:$0xff]
        %v370 = vld [vmem:[#allocation2 + $0x1d0] sm:$0xff]
        %v371 = vld [vmem:[#allocation2 + $0x1d8] sm:$0xff]
        %v372 = vld [vmem:[#allocation2 + $0x1e0] sm:$0xff]
        %v373 = vld [vmem:[#allocation2 + $0x1e8] sm:$0xff]
        %v374 = vld [vmem:[#allocation2 + $0x1f0] sm:$0xff]
        %v375 = vld [vmem:[#allocation2 + $0x1f8] sm:$0xff]
        %v376 = vld [vmem:[#allocation4] sm:$0xff]
        %v377 = vld [vmem:[#allocation4 + $0x8] sm:$0xff]
        %v378 = vld [vmem:[#allocation4 + $0x10] sm:$0xff]
        %v379 = vld [vmem:[#allocation4 + $0x18] sm:$0xff]
        %v380 = vld [vmem:[#allocation4 + $0x20] sm:$0xff]
        %v381 = vld [vmem:[#allocation4 + $0x28] sm:$0xff]
        %v382 = vld [vmem:[#allocation4 + $0x30] sm:$0xff]
        %v383 = vld [vmem:[#allocation4 + $0x38] sm:$0xff]
        %v384 = vld [vmem:[#allocation4 + $0x40] sm:$0xff]
        %v385 = vld [vmem:[#allocation4 + $0x48] sm:$0xff]
        %v386 = vld [vmem:[#allocation4 + $0x50] sm:$0xff]
        %v387 = vld [vmem:[#allocation4 + $0x58] sm:$0xff]
        %v388 = vld [vmem:[#allocation4 + $0x60] sm:$0xff]
        %v389 = vld [vmem:[#allocation4 + $0x68] sm:$0xff]
        %v390 = vld [vmem:[#allocation4 + $0x70] sm:$0xff]
        %v391 = vld [vmem:[#allocation4 + $0x78] sm:$0xff]
        %v392 = vld [vmem:[#allocation4 + $0x80] sm:$0xff]
        %v393 = vld [vmem:[#allocation4 + $0x88] sm:$0xff]
        %v394 = vld [vmem:[#allocation4 + $0x90] sm:$0xff]
        %v395 = vld [vmem:[#allocation4 + $0x98] sm:$0xff]
        %v396 = vld [vmem:[#allocation4 + $0xa0] sm:$0xff]
        %v397 = vld [vmem:[#allocation4 + $0xa8] sm:$0xff]
        %v398 = vld [vmem:[#allocation4 + $0xb0] sm:$0xff]
        %v399 = vld [vmem:[#allocation4 + $0xb8] sm:$0xff]
        %v400 = vld [vmem:[#allocation4 + $0xc0] sm:$0xff]
        %v401 = vld [vmem:[#allocation4 + $0xc8] sm:$0xff]
        %v402 = vld [vmem:[#allocation4 + $0xd0] sm:$0xff]
        %v403 = vld [vmem:[#allocation4 + $0xd8] sm:$0xff]
        %v404 = vld [vmem:[#allocation4 + $0xe0] sm:$0xff]
        %v405 = vld [vmem:[#allocation4 + $0xe8] sm:$0xff]
        %v406 = vld [vmem:[#allocation4 + $0xf0] sm:$0xff]
        %v407 = vld [vmem:[#allocation4 + $0xf8] sm:$0xff]
        %v408 = vld [vmem:[#allocation4 + $0x100] sm:$0xff]
        %v409 = vld [vmem:[#allocation4 + $0x108] sm:$0xff]
        %v410 = vld [vmem:[#allocation4 + $0x110] sm:$0xff]
        %v411 = vld [vmem:[#allocation4 + $0x118] sm:$0xff]
        %v412 = vld [vmem:[#allocation4 + $0x120] sm:$0xff]
        %v413 = vld [vmem:[#allocation4 + $0x128] sm:$0xff]
        %v414 = vld [vmem:[#allocation4 + $0x130] sm:$0xff]
        %v415 = vld [vmem:[#allocation4 + $0x138] sm:$0xff]
        %v416 = vld [vmem:[#allocation4 + $0x140] sm:$0xff]
        %v417 = vld [vmem:[#allocation4 + $0x148] sm:$0xff]
        %v418 = vld [vmem:[#allocation4 + $0x150] sm:$0xff]
        %v419 = vld [vmem:[#allocation4 + $0x158] sm:$0xff]
        %v420 = vld [vmem:[#allocation4 + $0x160] sm:$0xff]
        %v421 = vld [vmem:[#allocation4 + $0x168] sm:$0xff]
        %v422 = vld [vmem:[#allocation4 + $0x170] sm:$0xff]
        %v423 = vld [vmem:[#allocation4 + $0x178] sm:$0xff]
        %v424 = vld [vmem:[#allocation4 + $0x180] sm:$0xff]
        %v425 = vld [vmem:[#allocation4 + $0x188] sm:$0xff]
        %v426 = vld [vmem:[#allocation4 + $0x190] sm:$0xff]
        %v427 = vld [vmem:[#allocation4 + $0x198] sm:$0xff]
        %v428 = vld [vmem:[#allocation4 + $0x1a0] sm:$0xff]
        %v429 = vld [vmem:[#allocation4 + $0x1a8] sm:$0xff]
        %v430 = vld [vmem:[#allocation4 + $0x1b0] sm:$0xff]
        %v431 = vld [vmem:[#allocation4 + $0x1b8] sm:$0xff]
        %v432 = vld [vmem:[#allocation4 + $0x1c0] sm:$0xff]
        %v433 = vld [vmem:[#allocation4 + $0x1c8] sm:$0xff]
        %v434 = vld [vmem:[#allocation4 + $0x1d0] sm:$0xff]
        %v435 = vld [vmem:[#allocation4 + $0x1d8] sm:$0xff]
        %v436 = vld [vmem:[#allocation4 + $0x1e0] sm:$0xff]
        %v437 = vld [vmem:[#allocation4 + $0x1e8] sm:$0xff]
        %v438 = vld [vmem:[#allocation4 + $0x1f0] sm:$0xff]
        %v439 = vld [vmem:[#allocation4 + $0x1f8] sm:$0xff]
        %440 = vmatpush.msra.mxu0 %v436
        %441 = vmatpush.msra.mxu0 %v432
        %442 = vmatpush.msra.mxu0 %v428
        %443 = vmatpush.msra.mxu0 %v424
        %444 = vmatpush.msra.mxu0 %v420
        %445 = vmatpush.msra.mxu0 %v416
        %446 = vmatpush.msra.mxu0 %v412
        %447 = vmatpush.msra.mxu0 %v408
        %448 = vmatpush.msra.mxu0 %v404
        %449 = vmatpush.msra.mxu0 %v400
        %450 = vmatpush.msra.mxu0 %v396
        %451 = vmatpush.msra.mxu0 %v392
        %452 = vmatpush.msra.mxu0 %v388
        %453 = vmatpush.msra.mxu0 %v384
        %454 = vmatpush.msra.mxu0 %v380
        %455 = vmatpush.msra.mxu0 %v376
        %456 = vmatmul.f32.gmra.mxu0 %v310
        %v457 = vpop.f32.mrf.mxu0
        %v458 = vadd.f32 0.0, %v457
        %459 = vdwg.mxu0
        %460 = vmatpush.msra.mxu0 %v437
        %461 = vmatpush.msra.mxu0 %v433
        %462 = vmatpush.msra.mxu0 %v429
        %463 = vmatpush.msra.mxu0 %v425
        %464 = vmatpush.msra.mxu0 %v421
        %465 = vmatpush.msra.mxu0 %v417
        %466 = vmatpush.msra.mxu0 %v413
        %467 = vmatpush.msra.mxu0 %v409
        %468 = vmatpush.msra.mxu0 %v405
        %469 = vmatpush.msra.mxu0 %v401
        %470 = vmatpush.msra.mxu0 %v397
        %471 = vmatpush.msra.mxu0 %v393
        %472 = vmatpush.msra.mxu0 %v389
        %473 = vmatpush.msra.mxu0 %v385
        %474 = vmatpush.msra.mxu0 %v381
        %475 = vmatpush.msra.mxu0 %v377
        %476 = vmatmul.f32.gmra.mxu0 %v310
        %v477 = vpop.f32.mrf.mxu0
        %v478 = vadd.f32 0.0, %v477
        %479 = vdwg.mxu0
        %480 = vmatpush.msra.mxu0 %v438
        %481 = vmatpush.msra.mxu0 %v434
        %482 = vmatpush.msra.mxu0 %v430
        %483 = vmatpush.msra.mxu0 %v426
        %484 = vmatpush.msra.mxu0 %v422
        %485 = vmatpush.msra.mxu0 %v418
        %486 = vmatpush.msra.mxu0 %v414
        %487 = vmatpush.msra.mxu0 %v410
        %488 = vmatpush.msra.mxu0 %v406
        %489 = vmatpush.msra.mxu0 %v402
        %490 = vmatpush.msra.mxu0 %v398
        %491 = vmatpush.msra.mxu0 %v394
        %492 = vmatpush.msra.mxu0 %v390
        %493 = vmatpush.msra.mxu0 %v386
        %494 = vmatpush.msra.mxu0 %v382
        %495 = vmatpush.msra.mxu0 %v378
        %496 = vmatmul.f32.gmra.mxu0 %v310
        %v497 = vpop.f32.mrf.mxu0
        %v498 = vadd.f32 0.0, %v497
        %499 = vdwg.mxu0
        %500 = vmatpush.msra.mxu0 %v439
        %501 = vmatpush.msra.mxu0 %v435
        %502 = vmatpush.msra.mxu0 %v431
        %503 = vmatpush.msra.mxu0 %v427
        %504 = vmatpush.msra.mxu0 %v423
        %505 = vmatpush.msra.mxu0 %v419
        %506 = vmatpush.msra.mxu0 %v415
        %507 = vmatpush.msra.mxu0 %v411
        %508 = vmatpush.msra.mxu0 %v407
        %509 = vmatpush.msra.mxu0 %v403
        %510 = vmatpush.msra.mxu0 %v399
        %511 = vmatpush.msra.mxu0 %v395
        %512 = vmatpush.msra.mxu0 %v391
        %513 = vmatpush.msra.mxu0 %v387
        %514 = vmatpush.msra.mxu0 %v383
        %515 = vmatpush.msra.mxu0 %v379
        %516 = vmatmul.f32.gmra.mxu0 %v310
        %v517 = vpop.f32.mrf.mxu0
        %v518 = vadd.f32 0.0, %v517
        %519 = vdwg.mxu0
        %520 = vmatpush.msra.mxu0 %v372
        %521 = vmatpush.msra.mxu0 %v368
        %522 = vmatpush.msra.mxu0 %v364
        %523 = vmatpush.msra.mxu0 %v360
        %524 = vmatpush.msra.mxu0 %v356
        %525 = vmatpush.msra.mxu0 %v352
        %526 = vmatpush.msra.mxu0 %v348
        %527 = vmatpush.msra.mxu0 %v344
        %528 = vmatpush.msra.mxu0 %v340
        %529 = vmatpush.msra.mxu0 %v336
        %530 = vmatpush.msra.mxu0 %v332
        %531 = vmatpush.msra.mxu0 %v328
        %532 = vmatpush.msra.mxu0 %v324
        %533 = vmatpush.msra.mxu0 %v320
        %534 = vmatpush.msra.mxu0 %v316
        %535 = vmatpush.msra.mxu0 %v312
        %536 = vmatmul.f32.gmra.mxu0 %v309
        %v537 = vpop.f32.mrf.mxu0
        %v538 = vadd.f32 %v458, %v537
        %539 = vdwg.mxu0
        %540 = vmatpush.msra.mxu0 %v373
        %541 = vmatpush.msra.mxu0 %v369
        %542 = vmatpush.msra.mxu0 %v365
        %543 = vmatpush.msra.mxu0 %v361
        %544 = vmatpush.msra.mxu0 %v357
        %545 = vmatpush.msra.mxu0 %v353
        %546 = vmatpush.msra.mxu0 %v349
        %547 = vmatpush.msra.mxu0 %v345
        %548 = vmatpush.msra.mxu0 %v341
        %549 = vmatpush.msra.mxu0 %v337
        %550 = vmatpush.msra.mxu0 %v333
        %551 = vmatpush.msra.mxu0 %v329
        %552 = vmatpush.msra.mxu0 %v325
        %553 = vmatpush.msra.mxu0 %v321
        %554 = vmatpush.msra.mxu0 %v317
        %555 = vmatpush.msra.mxu0 %v313
        %556 = vmatmul.f32.gmra.mxu0 %v309
        %v557 = vpop.f32.mrf.mxu0
        %v558 = vadd.f32 %v478, %v557
        %559 = vdwg.mxu0
        %560 = vmatpush.msra.mxu0 %v374
        %561 = vmatpush.msra.mxu0 %v370
        %562 = vmatpush.msra.mxu0 %v366
        %563 = vmatpush.msra.mxu0 %v362
        %564 = vmatpush.msra.mxu0 %v358
        %565 = vmatpush.msra.mxu0 %v354
        %566 = vmatpush.msra.mxu0 %v350
        %567 = vmatpush.msra.mxu0 %v346
        %568 = vmatpush.msra.mxu0 %v342
        %569 = vmatpush.msra.mxu0 %v338
        %570 = vmatpush.msra.mxu0 %v334
        %571 = vmatpush.msra.mxu0 %v330
        %572 = vmatpush.msra.mxu0 %v326
        %573 = vmatpush.msra.mxu0 %v322
        %574 = vmatpush.msra.mxu0 %v318
        %575 = vmatpush.msra.mxu0 %v314
        %576 = vmatmul.f32.gmra.mxu0 %v309
        %v577 = vpop.f32.mrf.mxu0
        %v578 = vadd.f32 %v498, %v577
        %579 = vdwg.mxu0
        %580 = vmatpush.msra.mxu0 %v375
        %581 = vmatpush.msra.mxu0 %v371
        %582 = vmatpush.msra.mxu0 %v367
        %583 = vmatpush.msra.mxu0 %v363
        %584 = vmatpush.msra.mxu0 %v359
        %585 = vmatpush.msra.mxu0 %v355
        %586 = vmatpush.msra.mxu0 %v351
        %587 = vmatpush.msra.mxu0 %v347
        %588 = vmatpush.msra.mxu0 %v343
        %589 = vmatpush.msra.mxu0 %v339
        %590 = vmatpush.msra.mxu0 %v335
        %591 = vmatpush.msra.mxu0 %v331
        %592 = vmatpush.msra.mxu0 %v327
        %593 = vmatpush.msra.mxu0 %v323
        %594 = vmatpush.msra.mxu0 %v319
        %595 = vmatpush.msra.mxu0 %v315
        %596 = vmatmul.f32.gmra.mxu0 %v309
        %v597 = vpop.f32.mrf.mxu0
        %v598 = vadd.f32 %v518, %v597
        %599 = vdwg.mxu0
        %v600 = vld [vmem:[%s4] sm:$0xf]
        %v602 = vperm.slane %v600, 0
        %v603 = vperm.slane %v600, 1
        %v604 = vperm.slane %v600, 2
        %v605 = vperm.slane %v600, 3
        %v610 = vadd.f32 %v538, %v602
        %v611 = vadd.f32 %v558, %v603
        %v612 = vadd.f32 %v578, %v604
        %v613 = vadd.f32 %v598, %v605
        %v614 = vxor.u32 %v610, 2147483648
        %v615 = vmul.f32 %v614, 1.442695
        %v616 = vpow.pop %v615
        %v617 = vadd.f32 %v616, 1.0
        %v618 = vrcp.pop %v617
        %v619 = vmul.f32 %v617, %v618
        %v620 = vsub.f32 1.0, %v619
        %v621 = vmul.f32 %v618, %v620
        %v622 = vadd.f32 %v618, %v621
        %vm623 = vweird.f32 %v617
        %vm624 = vweird.f32 %v618
        %vm625 = vmor %vm623, %vm624
        %v626 = vsel %vm625, %v618, %v622
        %v627 = vand.u32 2147483647, %v617
        %vm628 = vcmp.eq.f32.partialorder %v627, 8.507059e+37
        %v629 = vand.u32 %v617, 2147483648
        %v630 = vor.u32 1.1754944e-38, %v629
        %v631 = vsel %vm628, %v630, %v626
        %v632 = vmul.f32 1.0, %v631
        %v633 = vxor.u32 %v611, 2147483648
        %v634 = vmul.f32 %v633, 1.442695
        %v635 = vpow.pop %v634
        %v636 = vadd.f32 %v635, 1.0
        %v637 = vrcp.pop %v636
        %v638 = vmul.f32 %v636, %v637
        %v639 = vsub.f32 1.0, %v638
        %v640 = vmul.f32 %v637, %v639
        %v641 = vadd.f32 %v637, %v640
        %vm642 = vweird.f32 %v636
        %vm643 = vweird.f32 %v637
        %vm644 = vmor %vm642, %vm643
        %v645 = vsel %vm644, %v637, %v641
        %v646 = vand.u32 2147483647, %v636
        %vm647 = vcmp.eq.f32.partialorder %v646, 8.507059e+37
        %v648 = vand.u32 %v636, 2147483648
        %v649 = vor.u32 1.1754944e-38, %v648
        %v650 = vsel %vm647, %v649, %v645
        %v651 = vmul.f32 1.0, %v650
        %v652 = vtanh.pop %v612
        %v653 = vxor.u32 %v613, 2147483648
        %v654 = vmul.f32 %v653, 1.442695
        %v655 = vpow.pop %v654
        %v656 = vadd.f32 %v655, 1.0
        %v657 = vrcp.pop %v656
        %v658 = vmul.f32 %v656, %v657
        %v659 = vsub.f32 1.0, %v658
        %v660 = vmul.f32 %v657, %v659
        %v661 = vadd.f32 %v657, %v660
        %vm662 = vweird.f32 %v656
        %vm663 = vweird.f32 %v657
        %vm664 = vmor %vm662, %vm663
        %v665 = vsel %vm664, %v657, %v661
        %v666 = vand.u32 2147483647, %v656
        %vm667 = vcmp.eq.f32.partialorder %v666, 8.507059e+37
        %v668 = vand.u32 %v656, 2147483648
        %v669 = vor.u32 1.1754944e-38, %v668
        %v670 = vsel %vm667, %v669, %v665
        %v671 = vmul.f32 1.0, %v670
        %v672 = vmul.f32 %v651, %v311
        %v673 = vmul.f32 %v632, %v652
        %v674 = vadd.f32 %v672, %v673
        %v675 = vtanh.pop %v674
        %v676 = vmul.f32 %v671, %v675
        %v677 = vld [vmem:[%s1] sm:$0xff]
        %v678 = vstv %s21
        %vm679 = vcmp.lt.s32.totalorder %v678, %v677
        %v680 = vsel %vm679, 1, 0
        %v681 = vcvt.s32.f32 %v680
        %683 = vset.pattern.permute.xlu0 0
        %684 = vperm.xlu0 %683, %v681
        %v685 = vpop.permute.xlu0 %684
        %v687 = vmul.f32 %v685, %v676
        %v688 = vsub.f32 1.0, %v681
        %690 = vset.pattern.permute.xlu0 0
        %691 = vperm.xlu0 %690, %v688
        %v692 = vpop.permute.xlu0 %691
        %v694 = vmul.f32 %v692, %v310
        %v695 = vadd.f32 %v687, %v694
        %v696 = vmul.f32 %v685, %v674
        %v697 = vmul.f32 %v692, %v311
        %v698 = vadd.f32 %v696, %v697
        %699 = vst [vmem:[%s6] sm:$0xff] %v695
        %700 = vst [vmem:[%s7] sm:$0xff] %v698
        %v701 = vmul.f32 %v695, %v685
        %702 = vst [vmem:[%s302] sm:$0xff] %v701
        %p703 = scmp.lt.s32.totalorder %s21, 7
        %s704 = scalar_select %p703, %s21, 7
        %s705 = smul.addr %s704, 8
        %s706 = scalar_lea.vmem %s5, %s705
        // Predicated region
        $region53: #{greedy_search_decoder.2} parent=39 // pred_check
          %p707 = pneg %p149
        $region54: #{greedy_search_decoder.2} parent=39 // pred_check_branch
          %709 = sbr.rel (%p707) target = $region56
        $region55: #{greedy_search_decoder.2} parent=39 // pred_region
          _
        $region56: #{greedy_search_decoder.2} parent=39 // pred_fallthru
          _
        // Predicated region
        $region57: #{greedy_search_decoder.2} parent=39 // pred_check
          %p710 = pneg %p170
        $region58: #{greedy_search_decoder.2} parent=39 // pred_check_branch
          %712 = sbr.rel (%p710) target = $region60
        $region59: #{greedy_search_decoder.2} parent=39 // pred_region
          _
        $region60: #{greedy_search_decoder.2} parent=39 // pred_fallthru
          _
        // Predicated region
        $region61: #{greedy_search_decoder.2} parent=39 // pred_check
          %p713 = pneg %p191
        $region62: #{greedy_search_decoder.2} parent=39 // pred_check_branch
          %715 = sbr.rel (%p713) target = $region64
        $region63: #{greedy_search_decoder.2} parent=39 // pred_region
          _
        $region64: #{greedy_search_decoder.2} parent=39 // pred_fallthru
          _
        // Predicated region
        $region65: #{greedy_search_decoder.2} parent=39 // pred_check
          %p716 = pneg %p170
        $region66: #{greedy_search_decoder.2} parent=39 // pred_check_branch
          %718 = sbr.rel (%p716) target = $region68
        $region67: #{greedy_search_decoder.2} parent=39 // pred_region
          _
        $region68: #{greedy_search_decoder.2} parent=39 // pred_fallthru
          _
        // Predicated region
        $region69: #{greedy_search_decoder.2} parent=39 // pred_check
          %p719 = pneg %p191
        $region70: #{greedy_search_decoder.2} parent=39 // pred_check_branch
          %721 = sbr.rel (%p719) target = $region72
        $region71: #{greedy_search_decoder.2} parent=39 // pred_region
          _
        $region72: #{greedy_search_decoder.2} parent=39 // pred_fallthru
          _
      $region40: #{greedy_search_decoder.2} parent=5 // pred_fallthru
        _
      %p722 = scmp.le.s32.totalorder 2, %s16
      // Predicated region
      $region73: #{greedy_search_decoder.2} parent=5 // pred_check
        %p723 = pneg %p722
      $region74: #{greedy_search_decoder.2} parent=5 // pred_check_branch
        %725 = sbr.rel (%p723) target = $region76
      $region75: #{greedy_search_decoder.2} parent=5 // pred_region
        %s726 = ssub.s32 %s16, 2
        // Predicated region
        $region77: #{greedy_search_decoder.2} parent=75 // pred_check
          %p727 = pneg %p155
        $region78: #{greedy_search_decoder.2} parent=75 // pred_check_branch
          %729 = sbr.rel (%p727) target = $region80
        $region79: #{greedy_search_decoder.2} parent=75 // pred_region
          %p730 = scmp.lt.s32.totalorder %s22, 7
          %s731 = scalar_select %p730, %s22, 7
          %s732 = smul.addr %s731, 8
          %s733 = scalar_lea.vmem %s5, %s732
        $region80: #{greedy_search_decoder.2} parent=75 // pred_fallthru
          _
      $region76: #{greedy_search_decoder.2} parent=5 // pred_fallthru
        _
    $region6: #{greedy_search_decoder.2} parent=1 // loop_footer
      %s20 = sadd.s32 1, %s16
    $region7: #{greedy_search_decoder.2} parent=1 // loop_footer_branch
      %15 = sbr.rel target = $region3
    $region8: #{greedy_search_decoder.2} parent=1 // loop_exit
      _
    %734 = vsyncpa [#allocation3], 1
    %s735 = scalar_lea.sflag [#allocation3], 1
    %736 = vsyncpa %s735, 1
    %737 = vsyncpa [#allocation5], 1

// kernel: greedy_search_decoder.3
$region0: #{greedy_search_decoder.3}
  #allocation0 [shape = 'u32[]', space=smem, size = 0x4, offset = 0x4, fixed_abs, tag = 'smem constant byte address 0x4 - core index']
  #allocation1 [shape = 'u32[72,128]{1,0:T(1,128)}', space=vmem, size = 0x9000, scoped, tag = 'internal scratch']
  #allocation2 [shape = 's32[1]{0:T(128)S(6)}', space=smem, size = 0x200, scoped, tag = 'scoped memory for greedy_search_decoder.3']
  %s0 = inlined_call_operand.<no memory space> [shape: s32[1], index: 0, kind: input, shape index: {}]
  %s1 = inlined_call_operand.vmem [shape: f32[8,8,128], index: 1, kind: input, shape index: {}]
  %s2 = inlined_call_operand.vmem [shape: f32[128,128], index: 2, kind: input, shape index: {}]
  %s3 = inlined_call_operand.vmem [shape: f32[128,512], index: 3, kind: input, shape index: {}]
  %s4 = inlined_call_operand.hbm [shape: f32[128,512], index: 4, kind: input, shape index: {}]
  %s5 = inlined_call_operand.vmem [shape: f32[1,512], index: 5, kind: input, shape index: {}]
  %s6 = inlined_call_operand.vmem [shape: f32[128,128], index: 6, kind: input, shape index: {}]
  %s7 = inlined_call_operand.vmem [shape: f32[128,128], index: 7, kind: input, shape index: {}]
  %s8 = inlined_call_operand.vmem [shape: f32[1,128], index: 8, kind: input, shape index: {}]
  %s9 = inlined_call_operand.vmem [shape: f32[128,128], index: 9, kind: input, shape index: {}]
  %s10 = inlined_call_operand.vmem [shape: f32[1,128], index: 10, kind: input, shape index: {}]
  %s11 = inlined_call_operand.vmem [shape: f32[8,128], index: 11, kind: input, shape index: {}]
  %s12 = inlined_call_operand.vmem [shape: f32[8,128], index: 12, kind: input, shape index: {}]
  %s13 = inlined_call_operand.hbm [shape: s32[6,8], index: 13, kind: output, shape index: {}]
  %s14 = sld [smem:[#allocation0]]
  $region73: #{greedy_search_decoder.3} parent=0
    _
  %s16 = ssub.s32 1, %s14
  %s17 = scalar_select 0, %s16, %s14
  %18 = sst [smem:[#allocation2]] %s0
  $region1: #{greedy_search_decoder.3} parent=0
    #allocation3 [shape = 'u8[262144]{0}', space=vmem, size = 0x40000, scoped, tag = 'input window, operand 4, single buffered']
    #allocation4 [shape = 's32[1]{0}', space=sflag, size = 0x4, scoped, tag = 'scoped memory for greedy_search_decoder.3']
    #allocation5 [shape = 's32[1]{0}', space=sflag, size = 0x4, scoped, tag = 'scoped memory for greedy_search_decoder.3']
    #allocation6 [shape = 'u8[4096]{0}', space=vmem, size = 0x1000, scoped, tag = 'output window, operand 0, single buffered']
    %19 = vsyncpa [#allocation4], 0
    %20 = vsyncpa [#allocation5], 0
    // Predicated region
    $region2: #{greedy_search_decoder.3} parent=1 // pred_check
      _
    $region3: #{greedy_search_decoder.3} parent=1 // pred_check_branch
      %22 = sbr.rel (0) target = $region5
    $region4: #{greedy_search_decoder.3} parent=1 // pred_region
      _
    $region5: #{greedy_search_decoder.3} parent=1 // pred_fallthru
      _
    // Predicated region
    $region6: #{greedy_search_decoder.3} parent=1 // pred_check
      _
    $region7: #{greedy_search_decoder.3} parent=1 // pred_check_branch
      %24 = sbr.rel (0) target = $region9
    $region8: #{greedy_search_decoder.3} parent=1 // pred_region
      _
    $region9: #{greedy_search_decoder.3} parent=1 // pred_fallthru
      _
    // Predicated region
    $region10: #{greedy_search_decoder.3} parent=1 // pred_check
      _
    $region11: #{greedy_search_decoder.3} parent=1 // pred_check_branch
      %26 = sbr.rel (0) target = $region13
    $region12: #{greedy_search_decoder.3} parent=1 // pred_region
      _
    $region13: #{greedy_search_decoder.3} parent=1 // pred_fallthru
      _
    // Predicated region
    $region14: #{greedy_search_decoder.3} parent=1 // pred_check
      _
    $region15: #{greedy_search_decoder.3} parent=1 // pred_check_branch
      %28 = sbr.rel (0) target = $region17
    $region16: #{greedy_search_decoder.3} parent=1 // pred_region
      _
    $region17: #{greedy_search_decoder.3} parent=1 // pred_fallthru
      _
    // Predicated region
    $region18: #{greedy_search_decoder.3} parent=1 // pred_check
      _
    $region19: #{greedy_search_decoder.3} parent=1 // pred_check_branch
      %30 = sbr.rel (0) target = $region21
    $region20: #{greedy_search_decoder.3} parent=1 // pred_region
      %32 = vsyncadd [#allocation4], 0
      %s33 = sshll.u32 %s4, 4
      %s34 = int_to_ptr.hbm [resolvable:$true] %s33
      %s35 = sshll.u32 [#allocation3], 4
      %s36 = int_to_ptr.vmem [resolvable:$true] %s35
      %41 = dma.hbm_to_vmem [thread:$0]  %s34, 8192, %s36, [#allocation4], 512, 512, 32
    $region21: #{greedy_search_decoder.3} parent=1 // pred_fallthru
      _
    // Predicated region
    $region22: #{greedy_search_decoder.3} parent=1 // pred_check
      _
    $region23: #{greedy_search_decoder.3} parent=1 // pred_check_branch
      %43 = sbr.rel (0) target = $region25
    $region24: #{greedy_search_decoder.3} parent=1 // pred_region
      _
    $region25: #{greedy_search_decoder.3} parent=1 // pred_fallthru
      _
    // Predicated region
    $region26: #{greedy_search_decoder.3} parent=1 // pred_check
      _
    $region27: #{greedy_search_decoder.3} parent=1 // pred_check_branch
      %45 = sbr.rel (0) target = $region29
    $region28: #{greedy_search_decoder.3} parent=1 // pred_region
      _
    $region29: #{greedy_search_decoder.3} parent=1 // pred_fallthru
      _
    // Predicated region
    $region30: #{greedy_search_decoder.3} parent=1 // pred_check
      _
    $region31: #{greedy_search_decoder.3} parent=1 // pred_check_branch
      %47 = sbr.rel (0) target = $region33
    $region32: #{greedy_search_decoder.3} parent=1 // pred_region
      _
    $region33: #{greedy_search_decoder.3} parent=1 // pred_fallthru
      _
    // Predicated region
    $region34: #{greedy_search_decoder.3} parent=1 // pred_check
      _
    $region35: #{greedy_search_decoder.3} parent=1 // pred_check_branch
      %49 = sbr.rel (0) target = $region37
    $region36: #{greedy_search_decoder.3} parent=1 // pred_region
      _
    $region37: #{greedy_search_decoder.3} parent=1 // pred_fallthru
      _
    // Predicated region
    $region38: #{greedy_search_decoder.3} parent=1 // pred_check
      _
    $region39: #{greedy_search_decoder.3} parent=1 // pred_check_branch
      %51 = sbr.rel (0) target = $region41
    $region40: #{greedy_search_decoder.3} parent=1 // pred_region
      _
    $region41: #{greedy_search_decoder.3} parent=1 // pred_fallthru
      _
    // Predicated region
    $region42: #{greedy_search_decoder.3} parent=1 // pred_check
      _
    $region43: #{greedy_search_decoder.3} parent=1 // pred_check_branch
      %53 = sbr.rel (0) target = $region45
    $region44: #{greedy_search_decoder.3} parent=1 // pred_region
      _
    $region45: #{greedy_search_decoder.3} parent=1 // pred_fallthru
      _
    // Predicated region
    $region46: #{greedy_search_decoder.3} parent=1 // pred_check
      _
    $region47: #{greedy_search_decoder.3} parent=1 // pred_check_branch
      %55 = sbr.rel (0) target = $region49
    $region48: #{greedy_search_decoder.3} parent=1 // pred_region
      _
    $region49: #{greedy_search_decoder.3} parent=1 // pred_fallthru
      _
    // Predicated region
    $region50: #{greedy_search_decoder.3} parent=1 // pred_check
      _
    $region51: #{greedy_search_decoder.3} parent=1 // pred_check_branch
      %57 = sbr.rel (0) target = $region53
    $region52: #{greedy_search_decoder.3} parent=1 // pred_region
      _
    $region53: #{greedy_search_decoder.3} parent=1 // pred_fallthru
      _
    // Predicated region
    $region54: #{greedy_search_decoder.3} parent=1 // pred_check
      _
    $region55: #{greedy_search_decoder.3} parent=1 // pred_check_branch
      %59 = sbr.rel (0) target = $region57
    $region56: #{greedy_search_decoder.3} parent=1 // pred_region
      %61 = dma.done [#allocation4], 8192
    $region57: #{greedy_search_decoder.3} parent=1 // pred_fallthru
      _
    %s62 = sld [smem:[#allocation2]]
    %v63 = vlaneseq
    %v64 = vand.u32 %v63, 127
    %v65 = vlaneseq
    %v66 = vshrl.u32 %v65, 7
    %v67 = vld [vmem:[%s11] sm:$0xff]
    %v68 = vld [vmem:[%s12] sm:$0xff]
    %v69 = vstv %s62
    %vm70 = vcmp.eq.s32.totalorder %v64, %v69
    %v71 = vsel %vm70, 1, 0
    %v72 = vcvt.s32.f32 %v71
    loop: start=0, step=1, limit=5
    $region58: #{greedy_search_decoder.3} parent=1 // loop_pre_header
      _
    $region59: #{greedy_search_decoder.3} parent=1 // loop_header
      %s74 = sphi 0, %s78
      %p75 = scmp.ge.s32.totalorder %s74, 5
      %v79 = vphi %v67, %v483
      %v80 = vphi %v68, %v481
      %v81 = vphi %v72, %v1118
      %v82 = vphi %v69, %v1115
    $region60: #{greedy_search_decoder.3} parent=1 // loop_header_branch
      %77 = sbr.rel (%p75) target = $region64
    $region61: #{greedy_search_decoder.3} parent=1 // loop_body
      %v83 = vld [vmem:[%s2] sm:$0xff]
      %v84 = vld [vmem:[%s2 + $0x8] sm:$0xff]
      %v85 = vld [vmem:[%s2 + $0x10] sm:$0xff]
      %v86 = vld [vmem:[%s2 + $0x18] sm:$0xff]
      %v87 = vld [vmem:[%s2 + $0x20] sm:$0xff]
      %v88 = vld [vmem:[%s2 + $0x28] sm:$0xff]
      %v89 = vld [vmem:[%s2 + $0x30] sm:$0xff]
      %v90 = vld [vmem:[%s2 + $0x38] sm:$0xff]
      %v91 = vld [vmem:[%s2 + $0x40] sm:$0xff]
      %v92 = vld [vmem:[%s2 + $0x48] sm:$0xff]
      %v93 = vld [vmem:[%s2 + $0x50] sm:$0xff]
      %v94 = vld [vmem:[%s2 + $0x58] sm:$0xff]
      %v95 = vld [vmem:[%s2 + $0x60] sm:$0xff]
      %v96 = vld [vmem:[%s2 + $0x68] sm:$0xff]
      %v97 = vld [vmem:[%s2 + $0x70] sm:$0xff]
      %v98 = vld [vmem:[%s2 + $0x78] sm:$0xff]
      %99 = vmatpush.msra.mxu0 %v98
      %100 = vmatpush.msra.mxu0 %v97
      %101 = vmatpush.msra.mxu0 %v96
      %102 = vmatpush.msra.mxu0 %v95
      %103 = vmatpush.msra.mxu0 %v94
      %104 = vmatpush.msra.mxu0 %v93
      %105 = vmatpush.msra.mxu0 %v92
      %106 = vmatpush.msra.mxu0 %v91
      %107 = vmatpush.msra.mxu0 %v90
      %108 = vmatpush.msra.mxu0 %v89
      %109 = vmatpush.msra.mxu0 %v88
      %110 = vmatpush.msra.mxu0 %v87
      %111 = vmatpush.msra.mxu0 %v86
      %112 = vmatpush.msra.mxu0 %v85
      %113 = vmatpush.msra.mxu0 %v84
      %114 = vmatpush.msra.mxu0 %v83
      %115 = vmatmul.f32.gmra.mxu0 %v81
      %v116 = vpop.f32.mrf.mxu0
      %v117 = vadd.f32 0.0, %v116
      %118 = vdwg.mxu0
      %v119 = vld [vmem:[%s3] sm:$0xff]
      %v120 = vld [vmem:[%s3 + $0x8] sm:$0xff]
      %v121 = vld [vmem:[%s3 + $0x10] sm:$0xff]
      %v122 = vld [vmem:[%s3 + $0x18] sm:$0xff]
      %v123 = vld [vmem:[%s3 + $0x20] sm:$0xff]
      %v124 = vld [vmem:[%s3 + $0x28] sm:$0xff]
      %v125 = vld [vmem:[%s3 + $0x30] sm:$0xff]
      %v126 = vld [vmem:[%s3 + $0x38] sm:$0xff]
      %v127 = vld [vmem:[%s3 + $0x40] sm:$0xff]
      %v128 = vld [vmem:[%s3 + $0x48] sm:$0xff]
      %v129 = vld [vmem:[%s3 + $0x50] sm:$0xff]
      %v130 = vld [vmem:[%s3 + $0x58] sm:$0xff]
      %v131 = vld [vmem:[%s3 + $0x60] sm:$0xff]
      %v132 = vld [vmem:[%s3 + $0x68] sm:$0xff]
      %v133 = vld [vmem:[%s3 + $0x70] sm:$0xff]
      %v134 = vld [vmem:[%s3 + $0x78] sm:$0xff]
      %v135 = vld [vmem:[%s3 + $0x80] sm:$0xff]
      %v136 = vld [vmem:[%s3 + $0x88] sm:$0xff]
      %v137 = vld [vmem:[%s3 + $0x90] sm:$0xff]
      %v138 = vld [vmem:[%s3 + $0x98] sm:$0xff]
      %v139 = vld [vmem:[%s3 + $0xa0] sm:$0xff]
      %v140 = vld [vmem:[%s3 + $0xa8] sm:$0xff]
      %v141 = vld [vmem:[%s3 + $0xb0] sm:$0xff]
      %v142 = vld [vmem:[%s3 + $0xb8] sm:$0xff]
      %v143 = vld [vmem:[%s3 + $0xc0] sm:$0xff]
      %v144 = vld [vmem:[%s3 + $0xc8] sm:$0xff]
      %v145 = vld [vmem:[%s3 + $0xd0] sm:$0xff]
      %v146 = vld [vmem:[%s3 + $0xd8] sm:$0xff]
      %v147 = vld [vmem:[%s3 + $0xe0] sm:$0xff]
      %v148 = vld [vmem:[%s3 + $0xe8] sm:$0xff]
      %v149 = vld [vmem:[%s3 + $0xf0] sm:$0xff]
      %v150 = vld [vmem:[%s3 + $0xf8] sm:$0xff]
      %v151 = vld [vmem:[%s3 + $0x100] sm:$0xff]
      %v152 = vld [vmem:[%s3 + $0x108] sm:$0xff]
      %v153 = vld [vmem:[%s3 + $0x110] sm:$0xff]
      %v154 = vld [vmem:[%s3 + $0x118] sm:$0xff]
      %v155 = vld [vmem:[%s3 + $0x120] sm:$0xff]
      %v156 = vld [vmem:[%s3 + $0x128] sm:$0xff]
      %v157 = vld [vmem:[%s3 + $0x130] sm:$0xff]
      %v158 = vld [vmem:[%s3 + $0x138] sm:$0xff]
      %v159 = vld [vmem:[%s3 + $0x140] sm:$0xff]
      %v160 = vld [vmem:[%s3 + $0x148] sm:$0xff]
      %v161 = vld [vmem:[%s3 + $0x150] sm:$0xff]
      %v162 = vld [vmem:[%s3 + $0x158] sm:$0xff]
      %v163 = vld [vmem:[%s3 + $0x160] sm:$0xff]
      %v164 = vld [vmem:[%s3 + $0x168] sm:$0xff]
      %v165 = vld [vmem:[%s3 + $0x170] sm:$0xff]
      %v166 = vld [vmem:[%s3 + $0x178] sm:$0xff]
      %v167 = vld [vmem:[%s3 + $0x180] sm:$0xff]
      %v168 = vld [vmem:[%s3 + $0x188] sm:$0xff]
      %v169 = vld [vmem:[%s3 + $0x190] sm:$0xff]
      %v170 = vld [vmem:[%s3 + $0x198] sm:$0xff]
      %v171 = vld [vmem:[%s3 + $0x1a0] sm:$0xff]
      %v172 = vld [vmem:[%s3 + $0x1a8] sm:$0xff]
      %v173 = vld [vmem:[%s3 + $0x1b0] sm:$0xff]
      %v174 = vld [vmem:[%s3 + $0x1b8] sm:$0xff]
      %v175 = vld [vmem:[%s3 + $0x1c0] sm:$0xff]
      %v176 = vld [vmem:[%s3 + $0x1c8] sm:$0xff]
      %v177 = vld [vmem:[%s3 + $0x1d0] sm:$0xff]
      %v178 = vld [vmem:[%s3 + $0x1d8] sm:$0xff]
      %v179 = vld [vmem:[%s3 + $0x1e0] sm:$0xff]
      %v180 = vld [vmem:[%s3 + $0x1e8] sm:$0xff]
      %v181 = vld [vmem:[%s3 + $0x1f0] sm:$0xff]
      %v182 = vld [vmem:[%s3 + $0x1f8] sm:$0xff]
      %v183 = vld [vmem:[#allocation3] sm:$0xff]
      %v184 = vld [vmem:[#allocation3 + $0x8] sm:$0xff]
      %v185 = vld [vmem:[#allocation3 + $0x10] sm:$0xff]
      %v186 = vld [vmem:[#allocation3 + $0x18] sm:$0xff]
      %v187 = vld [vmem:[#allocation3 + $0x20] sm:$0xff]
      %v188 = vld [vmem:[#allocation3 + $0x28] sm:$0xff]
      %v189 = vld [vmem:[#allocation3 + $0x30] sm:$0xff]
      %v190 = vld [vmem:[#allocation3 + $0x38] sm:$0xff]
      %v191 = vld [vmem:[#allocation3 + $0x40] sm:$0xff]
      %v192 = vld [vmem:[#allocation3 + $0x48] sm:$0xff]
      %v193 = vld [vmem:[#allocation3 + $0x50] sm:$0xff]
      %v194 = vld [vmem:[#allocation3 + $0x58] sm:$0xff]
      %v195 = vld [vmem:[#allocation3 + $0x60] sm:$0xff]
      %v196 = vld [vmem:[#allocation3 + $0x68] sm:$0xff]
      %v197 = vld [vmem:[#allocation3 + $0x70] sm:$0xff]
      %v198 = vld [vmem:[#allocation3 + $0x78] sm:$0xff]
      %v199 = vld [vmem:[#allocation3 + $0x80] sm:$0xff]
      %v200 = vld [vmem:[#allocation3 + $0x88] sm:$0xff]
      %v201 = vld [vmem:[#allocation3 + $0x90] sm:$0xff]
      %v202 = vld [vmem:[#allocation3 + $0x98] sm:$0xff]
      %v203 = vld [vmem:[#allocation3 + $0xa0] sm:$0xff]
      %v204 = vld [vmem:[#allocation3 + $0xa8] sm:$0xff]
      %v205 = vld [vmem:[#allocation3 + $0xb0] sm:$0xff]
      %v206 = vld [vmem:[#allocation3 + $0xb8] sm:$0xff]
      %v207 = vld [vmem:[#allocation3 + $0xc0] sm:$0xff]
      %v208 = vld [vmem:[#allocation3 + $0xc8] sm:$0xff]
      %v209 = vld [vmem:[#allocation3 + $0xd0] sm:$0xff]
      %v210 = vld [vmem:[#allocation3 + $0xd8] sm:$0xff]
      %v211 = vld [vmem:[#allocation3 + $0xe0] sm:$0xff]
      %v212 = vld [vmem:[#allocation3 + $0xe8] sm:$0xff]
      %v213 = vld [vmem:[#allocation3 + $0xf0] sm:$0xff]
      %v214 = vld [vmem:[#allocation3 + $0xf8] sm:$0xff]
      %v215 = vld [vmem:[#allocation3 + $0x100] sm:$0xff]
      %v216 = vld [vmem:[#allocation3 + $0x108] sm:$0xff]
      %v217 = vld [vmem:[#allocation3 + $0x110] sm:$0xff]
      %v218 = vld [vmem:[#allocation3 + $0x118] sm:$0xff]
      %v219 = vld [vmem:[#allocation3 + $0x120] sm:$0xff]
      %v220 = vld [vmem:[#allocation3 + $0x128] sm:$0xff]
      %v221 = vld [vmem:[#allocation3 + $0x130] sm:$0xff]
      %v222 = vld [vmem:[#allocation3 + $0x138] sm:$0xff]
      %v223 = vld [vmem:[#allocation3 + $0x140] sm:$0xff]
      %v224 = vld [vmem:[#allocation3 + $0x148] sm:$0xff]
      %v225 = vld [vmem:[#allocation3 + $0x150] sm:$0xff]
      %v226 = vld [vmem:[#allocation3 + $0x158] sm:$0xff]
      %v227 = vld [vmem:[#allocation3 + $0x160] sm:$0xff]
      %v228 = vld [vmem:[#allocation3 + $0x168] sm:$0xff]
      %v229 = vld [vmem:[#allocation3 + $0x170] sm:$0xff]
      %v230 = vld [vmem:[#allocation3 + $0x178] sm:$0xff]
      %v231 = vld [vmem:[#allocation3 + $0x180] sm:$0xff]
      %v232 = vld [vmem:[#allocation3 + $0x188] sm:$0xff]
      %v233 = vld [vmem:[#allocation3 + $0x190] sm:$0xff]
      %v234 = vld [vmem:[#allocation3 + $0x198] sm:$0xff]
      %v235 = vld [vmem:[#allocation3 + $0x1a0] sm:$0xff]
      %v236 = vld [vmem:[#allocation3 + $0x1a8] sm:$0xff]
      %v237 = vld [vmem:[#allocation3 + $0x1b0] sm:$0xff]
      %v238 = vld [vmem:[#allocation3 + $0x1b8] sm:$0xff]
      %v239 = vld [vmem:[#allocation3 + $0x1c0] sm:$0xff]
      %v240 = vld [vmem:[#allocation3 + $0x1c8] sm:$0xff]
      %v241 = vld [vmem:[#allocation3 + $0x1d0] sm:$0xff]
      %v242 = vld [vmem:[#allocation3 + $0x1d8] sm:$0xff]
      %v243 = vld [vmem:[#allocation3 + $0x1e0] sm:$0xff]
      %v244 = vld [vmem:[#allocation3 + $0x1e8] sm:$0xff]
      %v245 = vld [vmem:[#allocation3 + $0x1f0] sm:$0xff]
      %v246 = vld [vmem:[#allocation3 + $0x1f8] sm:$0xff]
      %247 = vmatpush.msra.mxu0 %v243
      %248 = vmatpush.msra.mxu0 %v239
      %249 = vmatpush.msra.mxu0 %v235
      %250 = vmatpush.msra.mxu0 %v231
      %251 = vmatpush.msra.mxu0 %v227
      %252 = vmatpush.msra.mxu0 %v223
      %253 = vmatpush.msra.mxu0 %v219
      %254 = vmatpush.msra.mxu0 %v215
      %255 = vmatpush.msra.mxu0 %v211
      %256 = vmatpush.msra.mxu0 %v207
      %257 = vmatpush.msra.mxu0 %v203
      %258 = vmatpush.msra.mxu0 %v199
      %259 = vmatpush.msra.mxu0 %v195
      %260 = vmatpush.msra.mxu0 %v191
      %261 = vmatpush.msra.mxu0 %v187
      %262 = vmatpush.msra.mxu0 %v183
      %263 = vmatmul.f32.gmra.mxu0 %v79
      %v264 = vpop.f32.mrf.mxu0
      %v265 = vadd.f32 0.0, %v264
      %266 = vdwg.mxu0
      %267 = vmatpush.msra.mxu0 %v244
      %268 = vmatpush.msra.mxu0 %v240
      %269 = vmatpush.msra.mxu0 %v236
      %270 = vmatpush.msra.mxu0 %v232
      %271 = vmatpush.msra.mxu0 %v228
      %272 = vmatpush.msra.mxu0 %v224
      %273 = vmatpush.msra.mxu0 %v220
      %274 = vmatpush.msra.mxu0 %v216
      %275 = vmatpush.msra.mxu0 %v212
      %276 = vmatpush.msra.mxu0 %v208
      %277 = vmatpush.msra.mxu0 %v204
      %278 = vmatpush.msra.mxu0 %v200
      %279 = vmatpush.msra.mxu0 %v196
      %280 = vmatpush.msra.mxu0 %v192
      %281 = vmatpush.msra.mxu0 %v188
      %282 = vmatpush.msra.mxu0 %v184
      %283 = vmatmul.f32.gmra.mxu0 %v79
      %v284 = vpop.f32.mrf.mxu0
      %v285 = vadd.f32 0.0, %v284
      %286 = vdwg.mxu0
      %287 = vmatpush.msra.mxu0 %v245
      %288 = vmatpush.msra.mxu0 %v241
      %289 = vmatpush.msra.mxu0 %v237
      %290 = vmatpush.msra.mxu0 %v233
      %291 = vmatpush.msra.mxu0 %v229
      %292 = vmatpush.msra.mxu0 %v225
      %293 = vmatpush.msra.mxu0 %v221
      %294 = vmatpush.msra.mxu0 %v217
      %295 = vmatpush.msra.mxu0 %v213
      %296 = vmatpush.msra.mxu0 %v209
      %297 = vmatpush.msra.mxu0 %v205
      %298 = vmatpush.msra.mxu0 %v201
      %299 = vmatpush.msra.mxu0 %v197
      %300 = vmatpush.msra.mxu0 %v193
      %301 = vmatpush.msra.mxu0 %v189
      %302 = vmatpush.msra.mxu0 %v185
      %303 = vmatmul.f32.gmra.mxu0 %v79
      %v304 = vpop.f32.mrf.mxu0
      %v305 = vadd.f32 0.0, %v304
      %306 = vdwg.mxu0
      %307 = vmatpush.msra.mxu0 %v246
      %308 = vmatpush.msra.mxu0 %v242
      %309 = vmatpush.msra.mxu0 %v238
      %310 = vmatpush.msra.mxu0 %v234
      %311 = vmatpush.msra.mxu0 %v230
      %312 = vmatpush.msra.mxu0 %v226
      %313 = vmatpush.msra.mxu0 %v222
      %314 = vmatpush.msra.mxu0 %v218
      %315 = vmatpush.msra.mxu0 %v214
      %316 = vmatpush.msra.mxu0 %v210
      %317 = vmatpush.msra.mxu0 %v206
      %318 = vmatpush.msra.mxu0 %v202
      %319 = vmatpush.msra.mxu0 %v198
      %320 = vmatpush.msra.mxu0 %v194
      %321 = vmatpush.msra.mxu0 %v190
      %322 = vmatpush.msra.mxu0 %v186
      %323 = vmatmul.f32.gmra.mxu0 %v79
      %v324 = vpop.f32.mrf.mxu0
      %v325 = vadd.f32 0.0, %v324
      %326 = vdwg.mxu0
      %327 = vmatpush.msra.mxu0 %v179
      %328 = vmatpush.msra.mxu0 %v175
      %329 = vmatpush.msra.mxu0 %v171
      %330 = vmatpush.msra.mxu0 %v167
      %331 = vmatpush.msra.mxu0 %v163
      %332 = vmatpush.msra.mxu0 %v159
      %333 = vmatpush.msra.mxu0 %v155
      %334 = vmatpush.msra.mxu0 %v151
      %335 = vmatpush.msra.mxu0 %v147
      %336 = vmatpush.msra.mxu0 %v143
      %337 = vmatpush.msra.mxu0 %v139
      %338 = vmatpush.msra.mxu0 %v135
      %339 = vmatpush.msra.mxu0 %v131
      %340 = vmatpush.msra.mxu0 %v127
      %341 = vmatpush.msra.mxu0 %v123
      %342 = vmatpush.msra.mxu0 %v119
      %343 = vmatmul.f32.gmra.mxu0 %v117
      %v344 = vpop.f32.mrf.mxu0
      %v345 = vadd.f32 %v265, %v344
      %346 = vdwg.mxu0
      %347 = vmatpush.msra.mxu0 %v180
      %348 = vmatpush.msra.mxu0 %v176
      %349 = vmatpush.msra.mxu0 %v172
      %350 = vmatpush.msra.mxu0 %v168
      %351 = vmatpush.msra.mxu0 %v164
      %352 = vmatpush.msra.mxu0 %v160
      %353 = vmatpush.msra.mxu0 %v156
      %354 = vmatpush.msra.mxu0 %v152
      %355 = vmatpush.msra.mxu0 %v148
      %356 = vmatpush.msra.mxu0 %v144
      %357 = vmatpush.msra.mxu0 %v140
      %358 = vmatpush.msra.mxu0 %v136
      %359 = vmatpush.msra.mxu0 %v132
      %360 = vmatpush.msra.mxu0 %v128
      %361 = vmatpush.msra.mxu0 %v124
      %362 = vmatpush.msra.mxu0 %v120
      %363 = vmatmul.f32.gmra.mxu0 %v117
      %v364 = vpop.f32.mrf.mxu0
      %v365 = vadd.f32 %v285, %v364
      %366 = vdwg.mxu0
      %367 = vmatpush.msra.mxu0 %v181
      %368 = vmatpush.msra.mxu0 %v177
      %369 = vmatpush.msra.mxu0 %v173
      %370 = vmatpush.msra.mxu0 %v169
      %371 = vmatpush.msra.mxu0 %v165
      %372 = vmatpush.msra.mxu0 %v161
      %373 = vmatpush.msra.mxu0 %v157
      %374 = vmatpush.msra.mxu0 %v153
      %375 = vmatpush.msra.mxu0 %v149
      %376 = vmatpush.msra.mxu0 %v145
      %377 = vmatpush.msra.mxu0 %v141
      %378 = vmatpush.msra.mxu0 %v137
      %379 = vmatpush.msra.mxu0 %v133
      %380 = vmatpush.msra.mxu0 %v129
      %381 = vmatpush.msra.mxu0 %v125
      %382 = vmatpush.msra.mxu0 %v121
      %383 = vmatmul.f32.gmra.mxu0 %v117
      %v384 = vpop.f32.mrf.mxu0
      %v385 = vadd.f32 %v305, %v384
      %386 = vdwg.mxu0
      %387 = vmatpush.msra.mxu0 %v182
      %388 = vmatpush.msra.mxu0 %v178
      %389 = vmatpush.msra.mxu0 %v174
      %390 = vmatpush.msra.mxu0 %v170
      %391 = vmatpush.msra.mxu0 %v166
      %392 = vmatpush.msra.mxu0 %v162
      %393 = vmatpush.msra.mxu0 %v158
      %394 = vmatpush.msra.mxu0 %v154
      %395 = vmatpush.msra.mxu0 %v150
      %396 = vmatpush.msra.mxu0 %v146
      %397 = vmatpush.msra.mxu0 %v142
      %398 = vmatpush.msra.mxu0 %v138
      %399 = vmatpush.msra.mxu0 %v134
      %400 = vmatpush.msra.mxu0 %v130
      %401 = vmatpush.msra.mxu0 %v126
      %402 = vmatpush.msra.mxu0 %v122
      %403 = vmatmul.f32.gmra.mxu0 %v117
      %v404 = vpop.f32.mrf.mxu0
      %v405 = vadd.f32 %v325, %v404
      %406 = vdwg.mxu0
      %v407 = vld [vmem:[%s5] sm:$0xf]
      %v409 = vperm.slane %v407, 0
      %v410 = vperm.slane %v407, 1
      %v411 = vperm.slane %v407, 2
      %v412 = vperm.slane %v407, 3
      %v417 = vadd.f32 %v345, %v409
      %v418 = vadd.f32 %v365, %v410
      %v419 = vadd.f32 %v385, %v411
      %v420 = vadd.f32 %v405, %v412
      %v421 = vxor.u32 %v417, 2147483648
      %v422 = vmul.f32 %v421, 1.442695
      %v423 = vpow.pop %v422
      %v424 = vadd.f32 %v423, 1.0
      %v425 = vrcp.pop %v424
      %v426 = vmul.f32 %v424, %v425
      %v427 = vsub.f32 1.0, %v426
      %v428 = vmul.f32 %v425, %v427
      %v429 = vadd.f32 %v425, %v428
      %vm430 = vweird.f32 %v424
      %vm431 = vweird.f32 %v425
      %vm432 = vmor %vm430, %vm431
      %v433 = vsel %vm432, %v425, %v429
      %v434 = vand.u32 2147483647, %v424
      %vm435 = vcmp.eq.f32.partialorder %v434, 8.507059e+37
      %v436 = vand.u32 %v424, 2147483648
      %v437 = vor.u32 1.1754944e-38, %v436
      %v438 = vsel %vm435, %v437, %v433
      %v439 = vmul.f32 1.0, %v438
      %v440 = vxor.u32 %v418, 2147483648
      %v441 = vmul.f32 %v440, 1.442695
      %v442 = vpow.pop %v441
      %v443 = vadd.f32 %v442, 1.0
      %v444 = vrcp.pop %v443
      %v445 = vmul.f32 %v443, %v444
      %v446 = vsub.f32 1.0, %v445
      %v447 = vmul.f32 %v444, %v446
      %v448 = vadd.f32 %v444, %v447
      %vm449 = vweird.f32 %v443
      %vm450 = vweird.f32 %v444
      %vm451 = vmor %vm449, %vm450
      %v452 = vsel %vm451, %v444, %v448
      %v453 = vand.u32 2147483647, %v443
      %vm454 = vcmp.eq.f32.partialorder %v453, 8.507059e+37
      %v455 = vand.u32 %v443, 2147483648
      %v456 = vor.u32 1.1754944e-38, %v455
      %v457 = vsel %vm454, %v456, %v452
      %v458 = vmul.f32 1.0, %v457
      %v459 = vtanh.pop %v419
      %v460 = vxor.u32 %v420, 2147483648
      %v461 = vmul.f32 %v460, 1.442695
      %v462 = vpow.pop %v461
      %v463 = vadd.f32 %v462, 1.0
      %v464 = vrcp.pop %v463
      %v465 = vmul.f32 %v463, %v464
      %v466 = vsub.f32 1.0, %v465
      %v467 = vmul.f32 %v464, %v466
      %v468 = vadd.f32 %v464, %v467
      %vm469 = vweird.f32 %v463
      %vm470 = vweird.f32 %v464
      %vm471 = vmor %vm469, %vm470
      %v472 = vsel %vm471, %v464, %v468
      %v473 = vand.u32 2147483647, %v463
      %vm474 = vcmp.eq.f32.partialorder %v473, 8.507059e+37
      %v475 = vand.u32 %v463, 2147483648
      %v476 = vor.u32 1.1754944e-38, %v475
      %v477 = vsel %vm474, %v476, %v472
      %v478 = vmul.f32 1.0, %v477
      %v479 = vmul.f32 %v458, %v80
      %v480 = vmul.f32 %v439, %v459
      %v481 = vadd.f32 %v479, %v480
      %v482 = vtanh.pop %v481
      %v483 = vmul.f32 %v478, %v482
      %v484 = vld [vmem:[%s1] sm:$0xff]
      %v485 = vld [vmem:[%s1 + $0x8] sm:$0xff]
      %v486 = vld [vmem:[%s1 + $0x10] sm:$0xff]
      %v487 = vld [vmem:[%s1 + $0x18] sm:$0xff]
      %v488 = vld [vmem:[%s1 + $0x20] sm:$0xff]
      %v489 = vld [vmem:[%s1 + $0x28] sm:$0xff]
      %v490 = vld [vmem:[%s1 + $0x30] sm:$0xff]
      %v491 = vld [vmem:[%s1 + $0x38] sm:$0xff]
      %v493 = vrot.slane %v483, 1
      %v494 = vrot.slane %v483, 2
      %v495 = vrot.slane %v483, 3
      %v496 = vrot.slane %v483, 4
      %v497 = vrot.slane %v483, 5
      %v498 = vrot.slane %v483, 6
      %v499 = vrot.slane %v483, 7
      %507 = vmatpush.xpose.msra.mxu0 0.0
      %508 = vmatpush.xpose.msra.mxu0 0.0
      %509 = vmatpush.xpose.msra.mxu0 0.0
      %510 = vmatpush.xpose.msra.mxu0 0.0
      %511 = vmatpush.xpose.msra.mxu0 0.0
      %512 = vmatpush.xpose.msra.mxu0 0.0
      %513 = vmatpush.xpose.msra.mxu0 0.0
      %514 = vmatpush.xpose.msra.mxu0 0.0
      %515 = vmatpush.xpose.msra.mxu0 0.0
      %516 = vmatpush.xpose.msra.mxu0 0.0
      %517 = vmatpush.xpose.msra.mxu0 0.0
      %518 = vmatpush.xpose.msra.mxu0 0.0
      %519 = vmatpush.xpose.msra.mxu0 0.0
      %520 = vmatpush.xpose.msra.mxu0 0.0
      %521 = vmatpush.xpose.msra.mxu0 0.0
      %522 = vmatpush.xpose.msra.mxu0 %v484
      %523 = vmatmul.f32.gmra.mxu0 %v483
      %v524 = vpop.f32.mrf.mxu0
      %v525 = vadd.f32 0.0, %v524
      %526 = vdwg.mxu0
      %527 = vmatpush.xpose.msra.mxu0 0.0
      %528 = vmatpush.xpose.msra.mxu0 0.0
      %529 = vmatpush.xpose.msra.mxu0 0.0
      %530 = vmatpush.xpose.msra.mxu0 0.0
      %531 = vmatpush.xpose.msra.mxu0 0.0
      %532 = vmatpush.xpose.msra.mxu0 0.0
      %533 = vmatpush.xpose.msra.mxu0 0.0
      %534 = vmatpush.xpose.msra.mxu0 0.0
      %535 = vmatpush.xpose.msra.mxu0 0.0
      %536 = vmatpush.xpose.msra.mxu0 0.0
      %537 = vmatpush.xpose.msra.mxu0 0.0
      %538 = vmatpush.xpose.msra.mxu0 0.0
      %539 = vmatpush.xpose.msra.mxu0 0.0
      %540 = vmatpush.xpose.msra.mxu0 0.0
      %541 = vmatpush.xpose.msra.mxu0 0.0
      %542 = vmatpush.xpose.msra.mxu0 %v485
      %543 = vmatmul.f32.gmra.mxu0 %v493
      %v544 = vpop.f32.mrf.mxu0
      %v545 = vadd.f32 0.0, %v544
      %546 = vdwg.mxu0
      %547 = vmatpush.xpose.msra.mxu0 0.0
      %548 = vmatpush.xpose.msra.mxu0 0.0
      %549 = vmatpush.xpose.msra.mxu0 0.0
      %550 = vmatpush.xpose.msra.mxu0 0.0
      %551 = vmatpush.xpose.msra.mxu0 0.0
      %552 = vmatpush.xpose.msra.mxu0 0.0
      %553 = vmatpush.xpose.msra.mxu0 0.0
      %554 = vmatpush.xpose.msra.mxu0 0.0
      %555 = vmatpush.xpose.msra.mxu0 0.0
      %556 = vmatpush.xpose.msra.mxu0 0.0
      %557 = vmatpush.xpose.msra.mxu0 0.0
      %558 = vmatpush.xpose.msra.mxu0 0.0
      %559 = vmatpush.xpose.msra.mxu0 0.0
      %560 = vmatpush.xpose.msra.mxu0 0.0
      %561 = vmatpush.xpose.msra.mxu0 0.0
      %562 = vmatpush.xpose.msra.mxu0 %v486
      %563 = vmatmul.f32.gmra.mxu0 %v494
      %v564 = vpop.f32.mrf.mxu0
      %v565 = vadd.f32 0.0, %v564
      %566 = vdwg.mxu0
      %567 = vmatpush.xpose.msra.mxu0 0.0
      %568 = vmatpush.xpose.msra.mxu0 0.0
      %569 = vmatpush.xpose.msra.mxu0 0.0
      %570 = vmatpush.xpose.msra.mxu0 0.0
      %571 = vmatpush.xpose.msra.mxu0 0.0
      %572 = vmatpush.xpose.msra.mxu0 0.0
      %573 = vmatpush.xpose.msra.mxu0 0.0
      %574 = vmatpush.xpose.msra.mxu0 0.0
      %575 = vmatpush.xpose.msra.mxu0 0.0
      %576 = vmatpush.xpose.msra.mxu0 0.0
      %577 = vmatpush.xpose.msra.mxu0 0.0
      %578 = vmatpush.xpose.msra.mxu0 0.0
      %579 = vmatpush.xpose.msra.mxu0 0.0
      %580 = vmatpush.xpose.msra.mxu0 0.0
      %581 = vmatpush.xpose.msra.mxu0 0.0
      %582 = vmatpush.xpose.msra.mxu0 %v487
      %583 = vmatmul.f32.gmra.mxu0 %v495
      %v584 = vpop.f32.mrf.mxu0
      %v585 = vadd.f32 0.0, %v584
      %586 = vdwg.mxu0
      %587 = vmatpush.xpose.msra.mxu0 0.0
      %588 = vmatpush.xpose.msra.mxu0 0.0
      %589 = vmatpush.xpose.msra.mxu0 0.0
      %590 = vmatpush.xpose.msra.mxu0 0.0
      %591 = vmatpush.xpose.msra.mxu0 0.0
      %592 = vmatpush.xpose.msra.mxu0 0.0
      %593 = vmatpush.xpose.msra.mxu0 0.0
      %594 = vmatpush.xpose.msra.mxu0 0.0
      %595 = vmatpush.xpose.msra.mxu0 0.0
      %596 = vmatpush.xpose.msra.mxu0 0.0
      %597 = vmatpush.xpose.msra.mxu0 0.0
      %598 = vmatpush.xpose.msra.mxu0 0.0
      %599 = vmatpush.xpose.msra.mxu0 0.0
      %600 = vmatpush.xpose.msra.mxu0 0.0
      %601 = vmatpush.xpose.msra.mxu0 0.0
      %602 = vmatpush.xpose.msra.mxu0 %v488
      %603 = vmatmul.f32.gmra.mxu0 %v496
      %v604 = vpop.f32.mrf.mxu0
      %v605 = vadd.f32 0.0, %v604
      %606 = vdwg.mxu0
      %607 = vmatpush.xpose.msra.mxu0 0.0
      %608 = vmatpush.xpose.msra.mxu0 0.0
      %609 = vmatpush.xpose.msra.mxu0 0.0
      %610 = vmatpush.xpose.msra.mxu0 0.0
      %611 = vmatpush.xpose.msra.mxu0 0.0
      %612 = vmatpush.xpose.msra.mxu0 0.0
      %613 = vmatpush.xpose.msra.mxu0 0.0
      %614 = vmatpush.xpose.msra.mxu0 0.0
      %615 = vmatpush.xpose.msra.mxu0 0.0
      %616 = vmatpush.xpose.msra.mxu0 0.0
      %617 = vmatpush.xpose.msra.mxu0 0.0
      %618 = vmatpush.xpose.msra.mxu0 0.0
      %619 = vmatpush.xpose.msra.mxu0 0.0
      %620 = vmatpush.xpose.msra.mxu0 0.0
      %621 = vmatpush.xpose.msra.mxu0 0.0
      %622 = vmatpush.xpose.msra.mxu0 %v489
      %623 = vmatmul.f32.gmra.mxu0 %v497
      %v624 = vpop.f32.mrf.mxu0
      %v625 = vadd.f32 0.0, %v624
      %626 = vdwg.mxu0
      %627 = vmatpush.xpose.msra.mxu0 0.0
      %628 = vmatpush.xpose.msra.mxu0 0.0
      %629 = vmatpush.xpose.msra.mxu0 0.0
      %630 = vmatpush.xpose.msra.mxu0 0.0
      %631 = vmatpush.xpose.msra.mxu0 0.0
      %632 = vmatpush.xpose.msra.mxu0 0.0
      %633 = vmatpush.xpose.msra.mxu0 0.0
      %634 = vmatpush.xpose.msra.mxu0 0.0
      %635 = vmatpush.xpose.msra.mxu0 0.0
      %636 = vmatpush.xpose.msra.mxu0 0.0
      %637 = vmatpush.xpose.msra.mxu0 0.0
      %638 = vmatpush.xpose.msra.mxu0 0.0
      %639 = vmatpush.xpose.msra.mxu0 0.0
      %640 = vmatpush.xpose.msra.mxu0 0.0
      %641 = vmatpush.xpose.msra.mxu0 0.0
      %642 = vmatpush.xpose.msra.mxu0 %v490
      %643 = vmatmul.f32.gmra.mxu0 %v498
      %v644 = vpop.f32.mrf.mxu0
      %v645 = vadd.f32 0.0, %v644
      %646 = vdwg.mxu0
      %647 = vmatpush.xpose.msra.mxu0 0.0
      %648 = vmatpush.xpose.msra.mxu0 0.0
      %649 = vmatpush.xpose.msra.mxu0 0.0
      %650 = vmatpush.xpose.msra.mxu0 0.0
      %651 = vmatpush.xpose.msra.mxu0 0.0
      %652 = vmatpush.xpose.msra.mxu0 0.0
      %653 = vmatpush.xpose.msra.mxu0 0.0
      %654 = vmatpush.xpose.msra.mxu0 0.0
      %655 = vmatpush.xpose.msra.mxu0 0.0
      %656 = vmatpush.xpose.msra.mxu0 0.0
      %657 = vmatpush.xpose.msra.mxu0 0.0
      %658 = vmatpush.xpose.msra.mxu0 0.0
      %659 = vmatpush.xpose.msra.mxu0 0.0
      %660 = vmatpush.xpose.msra.mxu0 0.0
      %661 = vmatpush.xpose.msra.mxu0 0.0
      %662 = vmatpush.xpose.msra.mxu0 %v491
      %663 = vmatmul.f32.gmra.mxu0 %v499
      %v664 = vpop.f32.mrf.mxu0
      %v665 = vadd.f32 0.0, %v664
      %666 = vdwg.mxu0
      %vm667 = vcmask 57344
      %v668 = vsel %vm667, %v525, -inf
      %669 = vmax.xlane.f32.xlu0 %v668
      %v670 = vpop.xlane.xlu0 %669
      %v671 = vsel %vm667, %v545, -inf
      %672 = vmax.xlane.f32.xlu0 %v671
      %v673 = vpop.xlane.xlu0 %672
      %v674 = vsel %vm667, %v565, -inf
      %675 = vmax.xlane.f32.xlu0 %v674
      %v676 = vpop.xlane.xlu0 %675
      %v677 = vsel %vm667, %v585, -inf
      %678 = vmax.xlane.f32.xlu0 %v677
      %v679 = vpop.xlane.xlu0 %678
      %v680 = vsel %vm667, %v605, -inf
      %681 = vmax.xlane.f32.xlu0 %v680
      %v682 = vpop.xlane.xlu0 %681
      %v683 = vsel %vm667, %v625, -inf
      %684 = vmax.xlane.f32.xlu0 %v683
      %v685 = vpop.xlane.xlu0 %684
      %v686 = vsel %vm667, %v645, -inf
      %687 = vmax.xlane.f32.xlu0 %v686
      %v688 = vpop.xlane.xlu0 %687
      %v689 = vsel %vm667, %v665, -inf
      %690 = vmax.xlane.f32.xlu0 %v689
      %v691 = vpop.xlane.xlu0 %690
      %v692 = vsub.f32 %v525, %v670
      %v693 = vsub.f32 %v545, %v673
      %v694 = vsub.f32 %v565, %v676
      %v695 = vsub.f32 %v585, %v679
      %v696 = vsub.f32 %v605, %v682
      %v697 = vsub.f32 %v625, %v685
      %v698 = vsub.f32 %v645, %v688
      %v699 = vsub.f32 %v665, %v691
      %v700 = vmul.f32 %v692, 1.442695
      %v701 = vpow.pop %v700
      %v702 = vmul.f32 %v693, 1.442695
      %v703 = vpow.pop %v702
      %v704 = vmul.f32 %v694, 1.442695
      %v705 = vpow.pop %v704
      %v706 = vmul.f32 %v695, 1.442695
      %v707 = vpow.pop %v706
      %v708 = vmul.f32 %v696, 1.442695
      %v709 = vpow.pop %v708
      %v710 = vmul.f32 %v697, 1.442695
      %v711 = vpow.pop %v710
      %v712 = vmul.f32 %v698, 1.442695
      %v713 = vpow.pop %v712
      %v714 = vmul.f32 %v699, 1.442695
      %v715 = vpow.pop %v714
      %v716 = vsel %vm667, %v701, 0.0
      %717 = vadd.xlane.f32.xlu0 %v716
      %v718 = vpop.xlane.xlu0 %717
      %v719 = vsel %vm667, %v703, 0.0
      %720 = vadd.xlane.f32.xlu0 %v719
      %v721 = vpop.xlane.xlu0 %720
      %v722 = vsel %vm667, %v705, 0.0
      %723 = vadd.xlane.f32.xlu0 %v722
      %v724 = vpop.xlane.xlu0 %723
      %v725 = vsel %vm667, %v707, 0.0
      %726 = vadd.xlane.f32.xlu0 %v725
      %v727 = vpop.xlane.xlu0 %726
      %v728 = vsel %vm667, %v709, 0.0
      %729 = vadd.xlane.f32.xlu0 %v728
      %v730 = vpop.xlane.xlu0 %729
      %v731 = vsel %vm667, %v711, 0.0
      %732 = vadd.xlane.f32.xlu0 %v731
      %v733 = vpop.xlane.xlu0 %732
      %v734 = vsel %vm667, %v713, 0.0
      %735 = vadd.xlane.f32.xlu0 %v734
      %v736 = vpop.xlane.xlu0 %735
      %v737 = vsel %vm667, %v715, 0.0
      %738 = vadd.xlane.f32.xlu0 %v737
      %v739 = vpop.xlane.xlu0 %738
      %v740 = vrcp.pop %v718
      %v741 = vrcp.pop %v721
      %v742 = vrcp.pop %v724
      %v743 = vrcp.pop %v727
      %v744 = vrcp.pop %v730
      %v745 = vrcp.pop %v733
      %v746 = vrcp.pop %v736
      %v747 = vrcp.pop %v739
      %v748 = vmul.f32 %v701, %v740
      %v749 = vmul.f32 %v703, %v741
      %v750 = vmul.f32 %v705, %v742
      %v751 = vmul.f32 %v707, %v743
      %v752 = vmul.f32 %v709, %v744
      %v753 = vmul.f32 %v711, %v745
      %v754 = vmul.f32 %v713, %v746
      %v755 = vmul.f32 %v715, %v747
      %vm756 = vcmask 64512
      %v758 = vsel %vm756, %v748, 0
      %760 = vmatpush.msra.mxu0 0.0
      %761 = vmatpush.msra.mxu0 0.0
      %762 = vmatpush.msra.mxu0 0.0
      %763 = vmatpush.msra.mxu0 0.0
      %764 = vmatpush.msra.mxu0 0.0
      %765 = vmatpush.msra.mxu0 0.0
      %766 = vmatpush.msra.mxu0 0.0
      %767 = vmatpush.msra.mxu0 0.0
      %768 = vmatpush.msra.mxu0 0.0
      %769 = vmatpush.msra.mxu0 0.0
      %770 = vmatpush.msra.mxu0 0.0
      %771 = vmatpush.msra.mxu0 0.0
      %772 = vmatpush.msra.mxu0 0.0
      %773 = vmatpush.msra.mxu0 0.0
      %774 = vmatpush.msra.mxu0 0.0
      %775 = vmatpush.msra.mxu0 %v484
      %776 = vmatmul.f32.gmra.mxu0 %v758
      %v777 = vpop.f32.mrf.mxu0
      %v778 = vadd.f32 0.0, %v777
      %779 = vdwg.mxu0
      %v781 = vsel %vm756, %v749, 0
      %783 = vmatpush.msra.mxu0 0.0
      %784 = vmatpush.msra.mxu0 0.0
      %785 = vmatpush.msra.mxu0 0.0
      %786 = vmatpush.msra.mxu0 0.0
      %787 = vmatpush.msra.mxu0 0.0
      %788 = vmatpush.msra.mxu0 0.0
      %789 = vmatpush.msra.mxu0 0.0
      %790 = vmatpush.msra.mxu0 0.0
      %791 = vmatpush.msra.mxu0 0.0
      %792 = vmatpush.msra.mxu0 0.0
      %793 = vmatpush.msra.mxu0 0.0
      %794 = vmatpush.msra.mxu0 0.0
      %795 = vmatpush.msra.mxu0 0.0
      %796 = vmatpush.msra.mxu0 0.0
      %797 = vmatpush.msra.mxu0 0.0
      %798 = vmatpush.msra.mxu0 %v485
      %799 = vmatmul.f32.gmra.mxu0 %v781
      %v800 = vpop.f32.mrf.mxu0
      %v801 = vadd.f32 0.0, %v800
      %802 = vdwg.mxu0
      %v804 = vsel %vm756, %v750, 0
      %806 = vmatpush.msra.mxu0 0.0
      %807 = vmatpush.msra.mxu0 0.0
      %808 = vmatpush.msra.mxu0 0.0
      %809 = vmatpush.msra.mxu0 0.0
      %810 = vmatpush.msra.mxu0 0.0
      %811 = vmatpush.msra.mxu0 0.0
      %812 = vmatpush.msra.mxu0 0.0
      %813 = vmatpush.msra.mxu0 0.0
      %814 = vmatpush.msra.mxu0 0.0
      %815 = vmatpush.msra.mxu0 0.0
      %816 = vmatpush.msra.mxu0 0.0
      %817 = vmatpush.msra.mxu0 0.0
      %818 = vmatpush.msra.mxu0 0.0
      %819 = vmatpush.msra.mxu0 0.0
      %820 = vmatpush.msra.mxu0 0.0
      %821 = vmatpush.msra.mxu0 %v486
      %822 = vmatmul.f32.gmra.mxu0 %v804
      %v823 = vpop.f32.mrf.mxu0
      %v824 = vadd.f32 0.0, %v823
      %825 = vdwg.mxu0
      %v827 = vsel %vm756, %v751, 0
      %829 = vmatpush.msra.mxu0 0.0
      %830 = vmatpush.msra.mxu0 0.0
      %831 = vmatpush.msra.mxu0 0.0
      %832 = vmatpush.msra.mxu0 0.0
      %833 = vmatpush.msra.mxu0 0.0
      %834 = vmatpush.msra.mxu0 0.0
      %835 = vmatpush.msra.mxu0 0.0
      %836 = vmatpush.msra.mxu0 0.0
      %837 = vmatpush.msra.mxu0 0.0
      %838 = vmatpush.msra.mxu0 0.0
      %839 = vmatpush.msra.mxu0 0.0
      %840 = vmatpush.msra.mxu0 0.0
      %841 = vmatpush.msra.mxu0 0.0
      %842 = vmatpush.msra.mxu0 0.0
      %843 = vmatpush.msra.mxu0 0.0
      %844 = vmatpush.msra.mxu0 %v487
      %845 = vmatmul.f32.gmra.mxu0 %v827
      %v846 = vpop.f32.mrf.mxu0
      %v847 = vadd.f32 0.0, %v846
      %848 = vdwg.mxu0
      %v850 = vsel %vm756, %v752, 0
      %852 = vmatpush.msra.mxu0 0.0
      %853 = vmatpush.msra.mxu0 0.0
      %854 = vmatpush.msra.mxu0 0.0
      %855 = vmatpush.msra.mxu0 0.0
      %856 = vmatpush.msra.mxu0 0.0
      %857 = vmatpush.msra.mxu0 0.0
      %858 = vmatpush.msra.mxu0 0.0
      %859 = vmatpush.msra.mxu0 0.0
      %860 = vmatpush.msra.mxu0 0.0
      %861 = vmatpush.msra.mxu0 0.0
      %862 = vmatpush.msra.mxu0 0.0
      %863 = vmatpush.msra.mxu0 0.0
      %864 = vmatpush.msra.mxu0 0.0
      %865 = vmatpush.msra.mxu0 0.0
      %866 = vmatpush.msra.mxu0 0.0
      %867 = vmatpush.msra.mxu0 %v488
      %868 = vmatmul.f32.gmra.mxu0 %v850
      %v869 = vpop.f32.mrf.mxu0
      %v870 = vadd.f32 0.0, %v869
      %871 = vdwg.mxu0
      %v873 = vsel %vm756, %v753, 0
      %875 = vmatpush.msra.mxu0 0.0
      %876 = vmatpush.msra.mxu0 0.0
      %877 = vmatpush.msra.mxu0 0.0
      %878 = vmatpush.msra.mxu0 0.0
      %879 = vmatpush.msra.mxu0 0.0
      %880 = vmatpush.msra.mxu0 0.0
      %881 = vmatpush.msra.mxu0 0.0
      %882 = vmatpush.msra.mxu0 0.0
      %883 = vmatpush.msra.mxu0 0.0
      %884 = vmatpush.msra.mxu0 0.0
      %885 = vmatpush.msra.mxu0 0.0
      %886 = vmatpush.msra.mxu0 0.0
      %887 = vmatpush.msra.mxu0 0.0
      %888 = vmatpush.msra.mxu0 0.0
      %889 = vmatpush.msra.mxu0 0.0
      %890 = vmatpush.msra.mxu0 %v489
      %891 = vmatmul.f32.gmra.mxu0 %v873
      %v892 = vpop.f32.mrf.mxu0
      %v893 = vadd.f32 0.0, %v892
      %894 = vdwg.mxu0
      %v896 = vsel %vm756, %v754, 0
      %898 = vmatpush.msra.mxu0 0.0
      %899 = vmatpush.msra.mxu0 0.0
      %900 = vmatpush.msra.mxu0 0.0
      %901 = vmatpush.msra.mxu0 0.0
      %902 = vmatpush.msra.mxu0 0.0
      %903 = vmatpush.msra.mxu0 0.0
      %904 = vmatpush.msra.mxu0 0.0
      %905 = vmatpush.msra.mxu0 0.0
      %906 = vmatpush.msra.mxu0 0.0
      %907 = vmatpush.msra.mxu0 0.0
      %908 = vmatpush.msra.mxu0 0.0
      %909 = vmatpush.msra.mxu0 0.0
      %910 = vmatpush.msra.mxu0 0.0
      %911 = vmatpush.msra.mxu0 0.0
      %912 = vmatpush.msra.mxu0 0.0
      %913 = vmatpush.msra.mxu0 %v490
      %914 = vmatmul.f32.gmra.mxu0 %v896
      %v915 = vpop.f32.mrf.mxu0
      %v916 = vadd.f32 0.0, %v915
      %917 = vdwg.mxu0
      %v919 = vsel %vm756, %v755, 0
      %921 = vmatpush.msra.mxu0 0.0
      %922 = vmatpush.msra.mxu0 0.0
      %923 = vmatpush.msra.mxu0 0.0
      %924 = vmatpush.msra.mxu0 0.0
      %925 = vmatpush.msra.mxu0 0.0
      %926 = vmatpush.msra.mxu0 0.0
      %927 = vmatpush.msra.mxu0 0.0
      %928 = vmatpush.msra.mxu0 0.0
      %929 = vmatpush.msra.mxu0 0.0
      %930 = vmatpush.msra.mxu0 0.0
      %931 = vmatpush.msra.mxu0 0.0
      %932 = vmatpush.msra.mxu0 0.0
      %933 = vmatpush.msra.mxu0 0.0
      %934 = vmatpush.msra.mxu0 0.0
      %935 = vmatpush.msra.mxu0 0.0
      %936 = vmatpush.msra.mxu0 %v491
      %937 = vmatmul.f32.gmra.mxu0 %v919
      %v938 = vpop.f32.mrf.mxu0
      %v939 = vadd.f32 0.0, %v938
      %940 = vdwg.mxu0
      %v941 = vld [vmem:[%s6] sm:$0xff]
      %v942 = vld [vmem:[%s6 + $0x8] sm:$0xff]
      %v943 = vld [vmem:[%s6 + $0x10] sm:$0xff]
      %v944 = vld [vmem:[%s6 + $0x18] sm:$0xff]
      %v945 = vld [vmem:[%s6 + $0x20] sm:$0xff]
      %v946 = vld [vmem:[%s6 + $0x28] sm:$0xff]
      %v947 = vld [vmem:[%s6 + $0x30] sm:$0xff]
      %v948 = vld [vmem:[%s6 + $0x38] sm:$0xff]
      %v949 = vld [vmem:[%s6 + $0x40] sm:$0xff]
      %v950 = vld [vmem:[%s6 + $0x48] sm:$0xff]
      %v951 = vld [vmem:[%s6 + $0x50] sm:$0xff]
      %v952 = vld [vmem:[%s6 + $0x58] sm:$0xff]
      %v953 = vld [vmem:[%s6 + $0x60] sm:$0xff]
      %v954 = vld [vmem:[%s6 + $0x68] sm:$0xff]
      %v955 = vld [vmem:[%s6 + $0x70] sm:$0xff]
      %v956 = vld [vmem:[%s6 + $0x78] sm:$0xff]
      %v957 = vld [vmem:[%s7] sm:$0xff]
      %v958 = vld [vmem:[%s7 + $0x8] sm:$0xff]
      %v959 = vld [vmem:[%s7 + $0x10] sm:$0xff]
      %v960 = vld [vmem:[%s7 + $0x18] sm:$0xff]
      %v961 = vld [vmem:[%s7 + $0x20] sm:$0xff]
      %v962 = vld [vmem:[%s7 + $0x28] sm:$0xff]
      %v963 = vld [vmem:[%s7 + $0x30] sm:$0xff]
      %v964 = vld [vmem:[%s7 + $0x38] sm:$0xff]
      %v965 = vld [vmem:[%s7 + $0x40] sm:$0xff]
      %v966 = vld [vmem:[%s7 + $0x48] sm:$0xff]
      %v967 = vld [vmem:[%s7 + $0x50] sm:$0xff]
      %v968 = vld [vmem:[%s7 + $0x58] sm:$0xff]
      %v969 = vld [vmem:[%s7 + $0x60] sm:$0xff]
      %v970 = vld [vmem:[%s7 + $0x68] sm:$0xff]
      %v971 = vld [vmem:[%s7 + $0x70] sm:$0xff]
      %v972 = vld [vmem:[%s7 + $0x78] sm:$0xff]
      %v981 = vrot.slane %v801, 7
      %vm982 = vcmask 1041409
      %v983 = vsel %vm982, %v981, %v778
      %v984 = vrot.slane %v824, 6
      %vm985 = vcmask 1042434
      %v986 = vsel %vm985, %v984, %v983
      %v987 = vrot.slane %v847, 5
      %vm988 = vcmask 1043459
      %v989 = vsel %vm988, %v987, %v986
      %v990 = vrot.slane %v870, 4
      %vm991 = vcmask 1044484
      %v992 = vsel %vm991, %v990, %v989
      %v993 = vrot.slane %v893, 3
      %vm994 = vcmask 1045509
      %v995 = vsel %vm994, %v993, %v992
      %v996 = vrot.slane %v916, 2
      %vm997 = vcmask 1046534
      %v998 = vsel %vm997, %v996, %v995
      %v999 = vrot.slane %v939, 1
      %vm1000 = vcmask 1047559
      %v1001 = vsel %vm1000, %v999, %v998
      %1003 = vmatpush.msra.mxu0 %v972
      %1004 = vmatpush.msra.mxu0 %v971
      %1005 = vmatpush.msra.mxu0 %v970
      %1006 = vmatpush.msra.mxu0 %v969
      %1007 = vmatpush.msra.mxu0 %v968
      %1008 = vmatpush.msra.mxu0 %v967
      %1009 = vmatpush.msra.mxu0 %v966
      %1010 = vmatpush.msra.mxu0 %v965
      %1011 = vmatpush.msra.mxu0 %v964
      %1012 = vmatpush.msra.mxu0 %v963
      %1013 = vmatpush.msra.mxu0 %v962
      %1014 = vmatpush.msra.mxu0 %v961
      %1015 = vmatpush.msra.mxu0 %v960
      %1016 = vmatpush.msra.mxu0 %v959
      %1017 = vmatpush.msra.mxu0 %v958
      %1018 = vmatpush.msra.mxu0 %v957
      %1019 = vmatmul.f32.gmra.mxu0 %v1001
      %v1020 = vpop.f32.mrf.mxu0
      %v1021 = vadd.f32 0.0, %v1020
      %1022 = vdwg.mxu0
      %1023 = vmatpush.msra.mxu0 %v956
      %1024 = vmatpush.msra.mxu0 %v955
      %1025 = vmatpush.msra.mxu0 %v954
      %1026 = vmatpush.msra.mxu0 %v953
      %1027 = vmatpush.msra.mxu0 %v952
      %1028 = vmatpush.msra.mxu0 %v951
      %1029 = vmatpush.msra.mxu0 %v950
      %1030 = vmatpush.msra.mxu0 %v949
      %1031 = vmatpush.msra.mxu0 %v948
      %1032 = vmatpush.msra.mxu0 %v947
      %1033 = vmatpush.msra.mxu0 %v946
      %1034 = vmatpush.msra.mxu0 %v945
      %1035 = vmatpush.msra.mxu0 %v944
      %1036 = vmatpush.msra.mxu0 %v943
      %1037 = vmatpush.msra.mxu0 %v942
      %1038 = vmatpush.msra.mxu0 %v941
      %1039 = vmatmul.f32.gmra.mxu0 %v483
      %v1040 = vpop.f32.mrf.mxu0
      %v1041 = vadd.f32 %v1021, %v1040
      %1042 = vdwg.mxu0
      %v1043 = vld [vmem:[%s8] sm:$0x1]
      %v1045 = vperm.slane %v1043, 0
      %v1047 = vadd.f32 %v1041, %v1045
      %v1048 = vtanh.pop %v1047
      %v1049 = vld [vmem:[%s9] sm:$0xff]
      %v1050 = vld [vmem:[%s9 + $0x8] sm:$0xff]
      %v1051 = vld [vmem:[%s9 + $0x10] sm:$0xff]
      %v1052 = vld [vmem:[%s9 + $0x18] sm:$0xff]
      %v1053 = vld [vmem:[%s9 + $0x20] sm:$0xff]
      %v1054 = vld [vmem:[%s9 + $0x28] sm:$0xff]
      %v1055 = vld [vmem:[%s9 + $0x30] sm:$0xff]
      %v1056 = vld [vmem:[%s9 + $0x38] sm:$0xff]
      %v1057 = vld [vmem:[%s9 + $0x40] sm:$0xff]
      %v1058 = vld [vmem:[%s9 + $0x48] sm:$0xff]
      %v1059 = vld [vmem:[%s9 + $0x50] sm:$0xff]
      %v1060 = vld [vmem:[%s9 + $0x58] sm:$0xff]
      %v1061 = vld [vmem:[%s9 + $0x60] sm:$0xff]
      %v1062 = vld [vmem:[%s9 + $0x68] sm:$0xff]
      %v1063 = vld [vmem:[%s9 + $0x70] sm:$0xff]
      %v1064 = vld [vmem:[%s9 + $0x78] sm:$0xff]
      %v1065 = vld [vmem:[%s10] sm:$0x1]
      %v1067 = vperm.slane %v1065, 0
      %1069 = vmatpush.msra.mxu0 %v1064
      %1070 = vmatpush.msra.mxu0 %v1063
      %1071 = vmatpush.msra.mxu0 %v1062
      %1072 = vmatpush.msra.mxu0 %v1061
      %1073 = vmatpush.msra.mxu0 %v1060
      %1074 = vmatpush.msra.mxu0 %v1059
      %1075 = vmatpush.msra.mxu0 %v1058
      %1076 = vmatpush.msra.mxu0 %v1057
      %1077 = vmatpush.msra.mxu0 %v1056
      %1078 = vmatpush.msra.mxu0 %v1055
      %1079 = vmatpush.msra.mxu0 %v1054
      %1080 = vmatpush.msra.mxu0 %v1053
      %1081 = vmatpush.msra.mxu0 %v1052
      %1082 = vmatpush.msra.mxu0 %v1051
      %1083 = vmatpush.msra.mxu0 %v1050
      %1084 = vmatpush.msra.mxu0 %v1049
      %1085 = vmatmul.f32.gmra.mxu0 %v1048
      %v1086 = vpop.f32.mrf.mxu0
      %v1087 = vadd.f32 %v1067, %v1086
      %1088 = vdwg.mxu0
      %1089 = vmax.xlane.f32.xlu0 %v1087
      %v1090 = vpop.xlane.xlu0 %1089
      %vm1091 = vcmp.eq.f32.partialorder %v1087, %v1090
      %v1092 = vsel %vm1091, %v64, 128
      %v1093 = vand.u32 %v1092, 65535
      %v1094 = vshra.s32 %v1092, 16
      %v1095 = vcvt.s32.f32 %v1093
      %v1096 = vcvt.s32.f32 %v1094
      %1097 = vmin.xlane.f32.xlu0 %v1096
      %v1098 = vpop.xlane.xlu0 %1097
      %vm1099 = vcmp.eq.f32.partialorder %v1096, %v1098
      %v1100 = vsel %vm1099, %v1095, inf
      %1101 = vmin.xlane.f32.xlu0 %v1100
      %v1102 = vpop.xlane.xlu0 %1101
      %v1103 = vcvt.f32.s32 %v1102
      %v1104 = vcvt.f32.s32 %v1098
      %v1105 = vshll.u32 %v1104, 16
      %v1106 = vadd.s32 %v1105, %v1103
      %s1107 = sadd.s32 %s74, 1
      %v1108 = vstv %s1107
      %vm1109 = vcmp.eq.s32.totalorder %v66, %v1108
      %v1110 = vperm.slane %v1106, %v64
      %v1111 = vsel %vm985, %v1110, %v1110
      %v1112 = vsel %vm988, %v1110, %v1111
      %v1113 = vsel %vm991, %v1110, %v1112
      %v1114 = vsel %vm994, %v1110, %v1113
      %v1115 = vsel %vm1109, %v1114, %v82
      %vm1116 = vcmp.eq.s32.totalorder %v64, %v1106
      %v1117 = vsel %vm1116, 1, 0
      %v1118 = vcvt.s32.f32 %v1117
    $region62: #{greedy_search_decoder.3} parent=1 // loop_footer
      %s78 = sadd.s32 1, %s74
    $region63: #{greedy_search_decoder.3} parent=1 // loop_footer_branch
      %73 = sbr.rel target = $region59
    $region64: #{greedy_search_decoder.3} parent=1 // loop_exit
      _
    %vm1119 = vcmask 62464
    %1120 = vst.msk [vmem:[#allocation6] sm:$0x3f] %vm1119, %v82
    // Predicated region
    $region65: #{greedy_search_decoder.3} parent=1 // pred_check
      _
    $region66: #{greedy_search_decoder.3} parent=1 // pred_check_branch
      %1122 = sbr.rel (0) target = $region68
    $region67: #{greedy_search_decoder.3} parent=1 // pred_region
      %1124 = vsyncadd [#allocation5], 0
      %s1126 = sshll.u32 [#allocation6], 4
      %s1127 = int_to_ptr.vmem [resolvable:$true] %s1126
      %s1128 = sshll.u32 %s13, 4
      %s1129 = int_to_ptr.hbm [resolvable:$true] %s1128
      %1131 = dma.vmem_to_hbm [thread:$0]  %s1127, 128, %s1129, [#allocation5]
    $region68: #{greedy_search_decoder.3} parent=1 // pred_fallthru
      _
    // Predicated region
    $region69: #{greedy_search_decoder.3} parent=1 // pred_check
      _
    $region70: #{greedy_search_decoder.3} parent=1 // pred_check_branch
      %1133 = sbr.rel (0) target = $region72
    $region71: #{greedy_search_decoder.3} parent=1 // pred_region
      %1135 = dma.done [#allocation5], 128
    $region72: #{greedy_search_decoder.3} parent=1 // pred_fallthru
      _
    %1136 = vsyncpa [#allocation4], 1
    %1137 = vsyncpa [#allocation5], 1

</llo_original>
